<compile_context>
chip_gen: v7x
topology: tpu7x:2x2x1
jax: 0.10.0
libtpu: 0.0.40
codegen_flags: <defaults>
</compile_context>

<pallas_src>
import math

import jax
import jax.numpy as jnp
from jax.experimental import pallas as pl
from jax.experimental.pallas import tpu as pltpu

LSTM_HIDDEN = 32   # lstm_out_channels fixed by the module
OUT_LANES = 128    # lane-dense output slab: [h | c | zero-pad] (2*H = 64 < 128)


def _round_up(v, m):
    return (v + m - 1) // m * m


def _lcm(a, b):
    return a * b // math.gcd(a, b)


def _vmem_limit_bytes():
    try:
        kind = jax.devices()[0].device_kind.lower()
    except Exception:
        kind = ""
    # v5e / v6e have 128 MiB physical VMEM -> raise the scoped limit well past the default.
    # v7x (64 MiB) and unknown chips: stay at 48 MiB to leave compiler scratch headroom.
    if "v5" in kind or "v6" in kind:
        return 96 * 1024 * 1024
    return 48 * 1024 * 1024


def _recurrent_gcn_kernel(
    a_ref, xw_ref, xhc_ref,
    w_gru_ih_ref, w_gru_hh_ref, b_gru_ih_ref, b_gru_hh_ref,
    w_lstm_x_ref, w_lstm_h_ref, b_lstm_ref,
    hc_ref,
    m_acc_ref,
):
    k = pl.program_id(1)

    # ---- K-tiled 'mean' aggregation:  m += A[i, k] @ XW[k]  (f32 VMEM accumulator) ----
    @pl.when(k == 0)
    def _():
        m_acc_ref[...] = jnp.zeros_like(m_acc_ref)

    m_acc_ref[...] += jnp.dot(a_ref[...], xw_ref[...],
                              preferred_element_type=jnp.float32)

    # ---- GRU + LSTM epilogue once the contraction over A's columns is complete ----
    @pl.when(k == pl.num_programs(1) - 1)
    def _():
        F = w_lstm_x_ref.shape[0]
        H = b_lstm_ref.shape[1] // 4
        wt = w_gru_ih_ref.dtype

        xhc = xhc_ref[...]                         # [T, F+2H] f32, packed [x | h0 | c0]
        xhc_b = xhc.astype(wt)
        x = xhc[:, 0:F]                            # elementwise use only
        c0 = xhc[:, F + H:F + 2 * H]               # elementwise use only
        m = m_acc_ref[...]                         # [T, F] f32

        # GRUCell(input=m, hidden=x); gate order r, z, n.  Lane-stacked fused dots.
        # w_gru_hh is zero-row-padded to (F+2H, 3F), so xhc @ w_gru_hh == x @ W_hh exactly
        # and no lane-offset slice feeds the MXU.
        g_ih = jnp.dot(m.astype(wt), w_gru_ih_ref[...],
                       preferred_element_type=jnp.float32) + b_gru_ih_ref[...]
        g_hh = jnp.dot(xhc_b, w_gru_hh_ref[...],
                       preferred_element_type=jnp.float32) + b_gru_hh_ref[...]
        r = jax.nn.sigmoid(g_ih[:, 0:F] + g_hh[:, 0:F])
        z = jax.nn.sigmoid(g_ih[:, F:2 * F] + g_hh[:, F:2 * F])
        n = jnp.tanh(g_ih[:, 2 * F:3 * F] + r * g_hh[:, 2 * F:3 * F])
        x_conv = (1.0 - z) * n + z * x             # H_tilde [T, F]

        # Single-timestep LSTM (batch = nodes); gate order i, f, g, o.
        # Two dots (x-part + zero-row-padded h-part) instead of a lane concat.
        gates = (jnp.dot(x_conv.astype(wt), w_lstm_x_ref[...],
                         preferred_element_type=jnp.float32)
                 + jnp.dot(xhc_b, w_lstm_h_ref[...],
                           preferred_element_type=jnp.float32)
                 + b_lstm_ref[...])                # [T, 4H]
        i_g = jax.nn.sigmoid(gates[:, 0:H])
        f_g = jax.nn.sigmoid(gates[:, H:2 * H])
        g_g = jnp.tanh(gates[:, 2 * H:3 * H])
        o_g = jax.nn.sigmoid(gates[:, 3 * H:4 * H])
        c_new = f_g * c0 + i_g * g_g
        h_new = o_g * jnp.tanh(c_new)

        # Lane-dense 128-wide store: [h | c | zeros] -> unmasked vst.
        pad = hc_ref.shape[1] - 2 * H
        hc_ref[...] = jnp.concatenate(
            [h_new, c_new, jnp.zeros((h_new.shape[0], pad), jnp.float32)], axis=1)


def recurrent_gcn_forward(x, edge_index, edge_weight, h0, c0, params, *,
                          tile_n=256, tile_k=1024):
    """x: [N, F], edge_index: [2, E] (row 0 = src, row 1 = dst), edge_weight: [E], h0/c0: [N, 32]."""
    N, F = x.shape
    H = LSTM_HIDDEN
    assert params["w_conv"].shape == (F, F), (
        "DyGrEncoder config requires conv_out_channels == node_features")

    src, dst = edge_index[0], edge_index[1]

    # --- tile sizing: tile_n multiple of 16 (bf16 sublane packing); tile_k multiple of 128
    #     lanes (or the full padded axis).  n_pad must be a multiple of both. ---
    tile_n = _round_up(max(16, min(tile_n, N)), 16)
    n_pad = _round_up(N, tile_n)
    if tile_k >= n_pad or n_pad <= 128:
        tile_k = n_pad
    else:
        tile_k = _round_up(min(tile_k, n_pad), 128)
        n_pad = _round_up(n_pad, _lcm(tile_n, tile_k))

    # --- adjacency glue: fold 1/deg into the edge weights, single scatter into the
    #     already-padded buffer, single bf16 cast (two N^2 passes total). ---
    deg = jnp.zeros((N,), jnp.float32).at[dst].add(1.0)
    w_norm = edge_weight.astype(jnp.float32) / jnp.maximum(deg[dst], 1.0)
    a_p = (jnp.zeros((n_pad, n_pad), jnp.float32)
           .at[dst, src].add(w_norm)).astype(jnp.bfloat16)

    # XW = x @ W_conv hoisted out of the tiled loop (tiny, done once).
    xw_p = (jnp.zeros((n_pad, F), jnp.float32)
            .at[:N].set(x.astype(jnp.float32) @ params["w_conv"])).astype(jnp.bfloat16)

    # Pack x | h0 | c0 into one f32 slab: one DMA per row tile instead of three.
    xhc = jnp.concatenate(
        [x.astype(jnp.float32), h0.astype(jnp.float32), c0.astype(jnp.float32)], axis=1)
    xhc_p = jnp.zeros((n_pad, F + 2 * H), jnp.float32).at[:N].set(xhc)

    F2 = F + 2 * H
    w_gru_ih = params["gru_wih"].astype(jnp.bfloat16)                       # [F, 3F]
    w_gru_hh = (jnp.zeros((F2, 3 * F), jnp.float32)
                .at[:F].set(params["gru_whh"])).astype(jnp.bfloat16)        # [F+2H, 3F]
    b_gru_ih = params["gru_bih"].astype(jnp.float32)                        # [1, 3F]
    b_gru_hh = params["gru_bhh"].astype(jnp.float32)                        # [1, 3F]
    w_lstm_x = params["lstm_wx"].astype(jnp.bfloat16)                       # [F, 4H]
    w_lstm_h = (jnp.zeros((F2, 4 * H), jnp.float32)
                .at[F:F + H].set(params["lstm_wh"])).astype(jnp.bfloat16)   # [F+2H, 4H]
    b_lstm = params["lstm_b"].astype(jnp.float32)                           # [1, 4H]

    grid = (n_pad // tile_n, n_pad // tile_k)
    in_specs = [
        pl.BlockSpec((tile_n, tile_k), lambda i, k: (i, k)),        # A row x contraction tile
        pl.BlockSpec((tile_k, F), lambda i, k: (k, 0)),             # XW contraction tile
        pl.BlockSpec((tile_n, F2), lambda i, k: (i, 0)),            # packed [x | h0 | c0]
        pl.BlockSpec((F, 3 * F), lambda i, k: (0, 0)),              # GRU W_ih (gate-stacked)
        pl.BlockSpec((F2, 3 * F), lambda i, k: (0, 0)),             # GRU W_hh (zero-row-padded)
        pl.BlockSpec((1, 3 * F), lambda i, k: (0, 0)),              # GRU b_ih
        pl.BlockSpec((1, 3 * F), lambda i, k: (0, 0)),              # GRU b_hh
        pl.BlockSpec((F, 4 * H), lambda i, k: (0, 0)),              # LSTM W (x-part)
        pl.BlockSpec((F2, 4 * H), lambda i, k: (0, 0)),             # LSTM W (h-part, zero-padded)
        pl.BlockSpec((1, 4 * H), lambda i, k: (0, 0)),              # LSTM bias
    ]
    out_specs = pl.BlockSpec((tile_n, OUT_LANES), lambda i, k: (i, 0))
    out_shape = jax.ShapeDtypeStruct((n_pad, OUT_LANES), jnp.float32)

    hc = pl.pallas_call(
        _recurrent_gcn_kernel,
        out_shape=out_shape,
        grid_spec=pltpu.PrefetchScalarGridSpec(
            num_scalar_prefetch=0,
            grid=grid,
            in_specs=in_specs,
            out_specs=out_specs,
            scratch_shapes=[pltpu.VMEM((tile_n, F), jnp.float32)],   # m accumulator
        ),
        compiler_params=pltpu.CompilerParams(
            dimension_semantics=("parallel", "arbitrary"),
            vmem_limit_bytes=_vmem_limit_bytes(),
        ),
    )(a_p, xw_p, xhc_p,
      w_gru_ih, w_gru_hh, b_gru_ih, b_gru_hh,
      w_lstm_x, w_lstm_h, b_lstm)

    h_new = hc[:N, :H]
    c_new = hc[:N, H:2 * H]
    # ReLU + Linear(32 -> 1) applied in glue (keeps kernel stores lane-dense).
    y = jnp.maximum(h_new, 0.0) @ params["lin_w"] + params["lin_b"]
    return y, h_new, c_new


def init_params(key, node_features):
    F = node_features  # GRU hidden state is x itself => requires conv_out_channels == node_features
    H = LSTM_HIDDEN
    ks = jax.random.split(key, 10)
    u = lambda k, shape: jax.random.uniform(k, shape, jnp.float32, -0.1, 0.1)
    return {
        # GatedGraphConv weight (num_layers=1): applied as x @ W
        "w_conv": u(ks[0], (F, F)),
        # GRUCell, gate-stacked along lanes [r | z | n], pre-transposed for m @ W
        "gru_wih": u(ks[1], (F, 3 * F)),
        "gru_whh": u(ks[2], (F, 3 * F)),
        "gru_bih": u(ks[3], (1, 3 * F)),
        "gru_bhh": u(ks[4], (1, 3 * F)),
        # LSTM, gate-stacked [i | f | g | o]; split x-part / h-part weights; biases combined
        "lstm_wx": u(ks[5], (F, 4 * H)),
        "lstm_wh": u(ks[6], (H, 4 * H)),
        "lstm_b": u(ks[7], (1, 4 * H)),
        # Linear(32 -> 1), applied in XLA glue
        "lin_w": u(ks[8], (H, 1)),
        "lin_b": u(ks[9], (1, 1)),
    }


def reference_forward(x, edge_index, edge_weight, h0, c0, params):
    """Pure-JAX f32 reference mirroring the PyTorch semantics."""
    N, F = x.shape
    H = LSTM_HIDDEN
    src, dst = edge_index[0], edge_index[1]
    A = jnp.zeros((N, N), jnp.float32).at[dst, src].add(edge_weight)
    deg = jnp.zeros((N,), jnp.float32).at[dst].add(1.0)
    A_norm = A / jnp.maximum(deg, 1.0)[:, None]

    m = A_norm @ (x @ params["w_conv"])
    g_ih = m @ params["gru_wih"] + params["gru_bih"]
    g_hh = x @ params["gru_whh"] + params["gru_bhh"]
    r = jax.nn.sigmoid(g_ih[:, :F] + g_hh[:, :F])
    z = jax.nn.sigmoid(g_ih[:, F:2 * F] + g_hh[:, F:2 * F])
    n = jnp.tanh(g_ih[:, 2 * F:] + r * g_hh[:, 2 * F:])
    xc = (1.0 - z) * n + z * x

    gates = xc @ params["lstm_wx"] + h0 @ params["lstm_wh"] + params["lstm_b"]
    i_g = jax.nn.sigmoid(gates[:, :H])
    f_g = jax.nn.sigmoid(gates[:, H:2 * H])
    g_g = jnp.tanh(gates[:, 2 * H:3 * H])
    o_g = jax.nn.sigmoid(gates[:, 3 * H:])
    c_new = f_g * c0 + i_g * g_g
    h_new = o_g * jnp.tanh(c_new)
    y = jnp.maximum(h_new, 0.0) @ params["lin_w"] + params["lin_b"]
    return y, h_new, c_new


if __name__ == "__main__":
    node_features = 8
    num_nodes = 200
    num_edges = 800

    key = jax.random.PRNGKey(0)
    k = jax.random.split(key, 8)
    x = jax.random.normal(k[0], (num_nodes, node_features), jnp.float32)
    src = jax.random.randint(k[1], (num_edges,), 0, num_nodes)
    dst = jax.random.randint(k[2], (num_edges,), 0, num_nodes)
    edge_index = jnp.stack([src, dst])
    edge_weight = jax.random.uniform(k[3], (num_edges,), jnp.float32, 0.1, 1.0)
    h0 = 0.1 * jax.random.normal(k[4], (num_nodes, LSTM_HIDDEN), jnp.float32)
    c0 = 0.1 * jax.random.normal(k[5], (num_nodes, LSTM_HIDDEN), jnp.float32)
    params = init_params(k[6], node_features)

    # tile_n=64, tile_k=128 -> n_pad=256, grid=(4, 2): exercises both the pipelined row axis
    # and the K-tiled contraction / accumulator epilogue at small scale.
    y, h_out, c_out = recurrent_gcn_forward(
        x, edge_index, edge_weight, h0, c0, params, tile_n=64, tile_k=128)
    jax.block_until_ready((y, h_out, c_out))

    # Sanity check vs pure-JAX f32 reference (loose tol: bf16 MXU operands).
    y_ref, h_ref, c_ref = reference_forward(x, edge_index, edge_weight, h0, c0, params)
    assert y.shape == (num_nodes, 1)
    assert h_out.shape == (num_nodes, LSTM_HIDDEN) and c_out.shape == (num_nodes, LSTM_HIDDEN)
    assert bool(jnp.allclose(y, y_ref, atol=5e-2))
    assert bool(jnp.allclose(h_out, h_ref, atol=5e-2))
    assert bool(jnp.allclose(c_out, c_ref, atol=5e-2))

    print("KERNEL_OK")
</pallas_src>

<mosaic_0001>
module attributes {stable_mosaic.version = 11 : i64} {
  func.func @_recurrent_gcn_kernel(%arg0: i32, %arg1: i32, %arg2: memref<64x128xbf16, #tpu.memory_space<vmem>>, %arg3: memref<128x8xbf16, #tpu.memory_space<vmem>>, %arg4: memref<64x72xf32, #tpu.memory_space<vmem>>, %arg5: memref<8x24xbf16, #tpu.memory_space<vmem>>, %arg6: memref<72x24xbf16, #tpu.memory_space<vmem>>, %arg7: memref<1x24xf32, #tpu.memory_space<vmem>>, %arg8: memref<1x24xf32, #tpu.memory_space<vmem>>, %arg9: memref<8x128xbf16, #tpu.memory_space<vmem>>, %arg10: memref<72x128xbf16, #tpu.memory_space<vmem>>, %arg11: memref<1x128xf32, #tpu.memory_space<vmem>>, %arg12: memref<64x128xf32, #tpu.memory_space<vmem>>, %arg13: memref<64x8xf32, #tpu.memory_space<vmem>>) attributes {dimension_semantics = [#tpu.dimension_semantics<parallel>, #tpu.dimension_semantics<arbitrary>], iteration_bounds = array<i64: 4, 2>, scalar_prefetch = 0 : i64, scratch_operands = 1 : i64, tpu.core_type = #tpu.core_type<tc>, window_params = [{transform_indices = @transform_0, window_bounds = array<i64: 64, 128>}, {transform_indices = @transform_1, window_bounds = array<i64: 128, 8>}, {transform_indices = @transform_2, window_bounds = array<i64: 64, 72>}, {pipeline_mode = #tpu.pipeline_mode<synchronous>, transform_indices = @transform_3, window_bounds = array<i64: 8, 24>}, {pipeline_mode = #tpu.pipeline_mode<synchronous>, transform_indices = @transform_4, window_bounds = array<i64: 72, 24>}, {pipeline_mode = #tpu.pipeline_mode<synchronous>, transform_indices = @transform_5, window_bounds = array<i64: 1, 24>}, {pipeline_mode = #tpu.pipeline_mode<synchronous>, transform_indices = @transform_6, window_bounds = array<i64: 1, 24>}, {pipeline_mode = #tpu.pipeline_mode<synchronous>, transform_indices = @transform_7, window_bounds = array<i64: 8, 128>}, {pipeline_mode = #tpu.pipeline_mode<synchronous>, transform_indices = @transform_8, window_bounds = array<i64: 72, 128>}, {pipeline_mode = #tpu.pipeline_mode<synchronous>, transform_indices = @transform_9, window_bounds = array<i64: 1, 128>}, {transform_indices = @transform_10, window_bounds = array<i64: 64, 128>}]} {
    %c0_i32 = arith.constant 0 : i32
    %0 = arith.cmpi eq, %arg1, %c0_i32 : i32
    %1 = arith.extui %0 : i1 to i32
    %c0_i32_0 = arith.constant 0 : i32
    %2 = arith.cmpi ne, %1, %c0_i32_0 : i32
    scf.if %2 {
      %cst_9 = arith.constant 0.000000e+00 : f32
      %12 = vector.broadcast %cst_9 : f32 to vector<64x8xf32>
      %c0_10 = arith.constant 0 : index
      %c0_11 = arith.constant 0 : index
      %13 = vector.load %arg13[%c0_10, %c0_11] : memref<64x8xf32, #tpu.memory_space<vmem>>, vector<64x8xf32>
      tpu.vector_store %arg13[%c0_10, %c0_11], %12 {strides = array<i32>} : memref<64x8xf32, #tpu.memory_space<vmem>>, vector<64x8xf32>,
    } else {
    }
    %c0 = arith.constant 0 : index
    %c0_1 = arith.constant 0 : index
    %3 = vector.load %arg13[%c0, %c0_1] : memref<64x8xf32, #tpu.memory_space<vmem>>, vector<64x8xf32>
    %c0_2 = arith.constant 0 : index
    %c0_3 = arith.constant 0 : index
    %4 = vector.load %arg2[%c0_2, %c0_3] : memref<64x128xbf16, #tpu.memory_space<vmem>>, vector<64x128xbf16>
    %c0_4 = arith.constant 0 : index
    %c0_5 = arith.constant 0 : index
    %5 = vector.load %arg3[%c0_4, %c0_5] : memref<128x8xbf16, #tpu.memory_space<vmem>>, vector<128x8xbf16>
    %cst = arith.constant dense<0.000000e+00> : vector<64x8xf32>
    %6 = tpu.matmul %4, %5, %cst {dimension_numbers = #tpu.dot_dimension_numbers<[1], [0], [0], [1], [0, 0, 1, 1], [], []>} : vector<64x128xbf16>, vector<128x8xbf16>, vector<64x8xf32> -> vector<64x8xf32>
    %7 = arith.addf %3, %6 : vector<64x8xf32>
    %c0_6 = arith.constant 0 : index
    %c0_7 = arith.constant 0 : index
    %8 = vector.load %arg13[%c0_6, %c0_7] : memref<64x8xf32, #tpu.memory_space<vmem>>, vector<64x8xf32>
    tpu.vector_store %arg13[%c0_6, %c0_7], %7 {strides = array<i32>} : memref<64x8xf32, #tpu.memory_space<vmem>>, vector<64x8xf32>,
    %c1_i32 = arith.constant 1 : i32
    %9 = arith.cmpi eq, %arg1, %c1_i32 : i32
    %10 = arith.extui %9 : i1 to i32
    %c0_i32_8 = arith.constant 0 : i32
    %11 = arith.cmpi ne, %10, %c0_i32_8 : i32
    scf.if %11 {
      %c0_9 = arith.constant 0 : index
      %c0_10 = arith.constant 0 : index
      %12 = vector.load %arg4[%c0_9, %c0_10] : memref<64x72xf32, #tpu.memory_space<vmem>>, vector<64x72xf32>
      %13 = arith.truncf %12 : vector<64x72xf32> to vector<64x72xbf16>
      %14 = vector.extract_strided_slice %12 {offsets = [0, 0], sizes = [64, 8], strides = [1, 1]} : vector<64x72xf32> to vector<64x8xf32>
      %15 = vector.extract_strided_slice %12 {offsets = [0, 40], sizes = [64, 32], strides = [1, 1]} : vector<64x72xf32> to vector<64x32xf32>
      %c0_11 = arith.constant 0 : index
      %c0_12 = arith.constant 0 : index
      %16 = vector.load %arg13[%c0_11, %c0_12] : memref<64x8xf32, #tpu.memory_space<vmem>>, vector<64x8xf32>
      %17 = arith.truncf %16 : vector<64x8xf32> to vector<64x8xbf16>
      %c0_13 = arith.constant 0 : index
      %c0_14 = arith.constant 0 : index
      %18 = vector.load %arg5[%c0_13, %c0_14] : memref<8x24xbf16, #tpu.memory_space<vmem>>, vector<8x24xbf16>
      %cst_15 = arith.constant dense<0.000000e+00> : vector<64x24xf32>
      %19 = tpu.matmul %17, %18, %cst_15 {dimension_numbers = #tpu.dot_dimension_numbers<[1], [0], [0], [1], [0, 0, 1, 1], [], []>} : vector<64x8xbf16>, vector<8x24xbf16>, vector<64x24xf32> -> vector<64x24xf32>
      %c0_16 = arith.constant 0 : index
      %c0_17 = arith.constant 0 : index
      %20 = vector.load %arg7[%c0_16, %c0_17] : memref<1x24xf32, #tpu.memory_space<vmem>>, vector<1x24xf32>
      %21 = vector.broadcast %20 : vector<1x24xf32> to vector<64x24xf32>
      %22 = arith.addf %19, %21 : vector<64x24xf32>
      %c0_18 = arith.constant 0 : index
      %c0_19 = arith.constant 0 : index
      %23 = vector.load %arg6[%c0_18, %c0_19] : memref<72x24xbf16, #tpu.memory_space<vmem>>, vector<72x24xbf16>
      %cst_20 = arith.constant dense<0.000000e+00> : vector<64x24xf32>
      %24 = tpu.matmul %13, %23, %cst_20 {dimension_numbers = #tpu.dot_dimension_numbers<[1], [0], [0], [1], [0, 0, 1, 1], [], []>} : vector<64x72xbf16>, vector<72x24xbf16>, vector<64x24xf32> -> vector<64x24xf32>
      %c0_21 = arith.constant 0 : index
      %c0_22 = arith.constant 0 : index
      %25 = vector.load %arg8[%c0_21, %c0_22] : memref<1x24xf32, #tpu.memory_space<vmem>>, vector<1x24xf32>
      %26 = vector.broadcast %25 : vector<1x24xf32> to vector<64x24xf32>
      %27 = arith.addf %24, %26 : vector<64x24xf32>
      %28 = vector.extract_strided_slice %22 {offsets = [0, 0], sizes = [64, 8], strides = [1, 1]} : vector<64x24xf32> to vector<64x8xf32>
      %29 = vector.extract_strided_slice %27 {offsets = [0, 0], sizes = [64, 8], strides = [1, 1]} : vector<64x24xf32> to vector<64x8xf32>
      %30 = arith.addf %28, %29 : vector<64x8xf32>
      %31 = arith.negf %30 : vector<64x8xf32>
      %32 = math.exp %31 : vector<64x8xf32>
      %cst_23 = arith.constant 1.000000e+00 : f32
      %33 = vector.broadcast %cst_23 : f32 to vector<64x8xf32>
      %34 = arith.addf %33, %32 : vector<64x8xf32>
      %35 = arith.divf %33, %34 : vector<64x8xf32>
      %36 = vector.extract_strided_slice %22 {offsets = [0, 8], sizes = [64, 8], strides = [1, 1]} : vector<64x24xf32> to vector<64x8xf32>
      %37 = vector.extract_strided_slice %27 {offsets = [0, 8], sizes = [64, 8], strides = [1, 1]} : vector<64x24xf32> to vector<64x8xf32>
      %38 = arith.addf %36, %37 : vector<64x8xf32>
      %39 = arith.negf %38 : vector<64x8xf32>
      %40 = math.exp %39 : vector<64x8xf32>
      %cst_24 = arith.constant 1.000000e+00 : f32
      %41 = vector.broadcast %cst_24 : f32 to vector<64x8xf32>
      %42 = arith.addf %41, %40 : vector<64x8xf32>
      %43 = arith.divf %41, %42 : vector<64x8xf32>
      %44 = vector.extract_strided_slice %22 {offsets = [0, 16], sizes = [64, 8], strides = [1, 1]} : vector<64x24xf32> to vector<64x8xf32>
      %45 = vector.extract_strided_slice %27 {offsets = [0, 16], sizes = [64, 8], strides = [1, 1]} : vector<64x24xf32> to vector<64x8xf32>
      %46 = arith.mulf %35, %45 : vector<64x8xf32>
      %47 = arith.addf %44, %46 : vector<64x8xf32>
      %48 = math.tanh %47 : vector<64x8xf32>
      %cst_25 = arith.constant 1.000000e+00 : f32
      %49 = vector.broadcast %cst_25 : f32 to vector<64x8xf32>
      %50 = arith.subf %49, %43 : vector<64x8xf32>
      %51 = arith.mulf %50, %48 : vector<64x8xf32>
      %52 = arith.mulf %43, %14 : vector<64x8xf32>
      %53 = arith.addf %51, %52 : vector<64x8xf32>
      %54 = arith.truncf %53 : vector<64x8xf32> to vector<64x8xbf16>
      %c0_26 = arith.constant 0 : index
      %c0_27 = arith.constant 0 : index
      %55 = vector.load %arg9[%c0_26, %c0_27] : memref<8x128xbf16, #tpu.memory_space<vmem>>, vector<8x128xbf16>
      %cst_28 = arith.constant dense<0.000000e+00> : vector<64x128xf32>
      %56 = tpu.matmul %54, %55, %cst_28 {dimension_numbers = #tpu.dot_dimension_numbers<[1], [0], [0], [1], [0, 0, 1, 1], [], []>} : vector<64x8xbf16>, vector<8x128xbf16>, vector<64x128xf32> -> vector<64x128xf32>
      %c0_29 = arith.constant 0 : index
      %c0_30 = arith.constant 0 : index
      %57 = vector.load %arg10[%c0_29, %c0_30] : memref<72x128xbf16, #tpu.memory_space<vmem>>, vector<72x128xbf16>
      %cst_31 = arith.constant dense<0.000000e+00> : vector<64x128xf32>
      %58 = tpu.matmul %13, %57, %cst_31 {dimension_numbers = #tpu.dot_dimension_numbers<[1], [0], [0], [1], [0, 0, 1, 1], [], []>} : vector<64x72xbf16>, vector<72x128xbf16>, vector<64x128xf32> -> vector<64x128xf32>
      %59 = arith.addf %56, %58 : vector<64x128xf32>
      %c0_32 = arith.constant 0 : index
      %c0_33 = arith.constant 0 : index
      %60 = vector.load %arg11[%c0_32, %c0_33] : memref<1x128xf32, #tpu.memory_space<vmem>>, vector<1x128xf32>
      %61 = vector.broadcast %60 : vector<1x128xf32> to vector<64x128xf32>
      %62 = arith.addf %59, %61 : vector<64x128xf32>
      %63 = vector.extract_strided_slice %62 {offsets = [0, 0], sizes = [64, 32], strides = [1, 1]} : vector<64x128xf32> to vector<64x32xf32>
      %64 = arith.negf %63 : vector<64x32xf32>
      %65 = math.exp %64 : vector<64x32xf32>
      %cst_34 = arith.constant 1.000000e+00 : f32
      %66 = vector.broadcast %cst_34 : f32 to vector<64x32xf32>
      %67 = arith.addf %66, %65 : vector<64x32xf32>
      %68 = arith.divf %66, %67 : vector<64x32xf32>
      %69 = vector.extract_strided_slice %62 {offsets = [0, 32], sizes = [64, 32], strides = [1, 1]} : vector<64x128xf32> to vector<64x32xf32>
      %70 = arith.negf %69 : vector<64x32xf32>
      %71 = math.exp %70 : vector<64x32xf32>
      %cst_35 = arith.constant 1.000000e+00 : f32
      %72 = vector.broadcast %cst_35 : f32 to vector<64x32xf32>
      %73 = arith.addf %72, %71 : vector<64x32xf32>
      %74 = arith.divf %72, %73 : vector<64x32xf32>
      %75 = vector.extract_strided_slice %62 {offsets = [0, 64], sizes = [64, 32], strides = [1, 1]} : vector<64x128xf32> to vector<64x32xf32>
      %76 = math.tanh %75 : vector<64x32xf32>
      %77 = vector.extract_strided_slice %62 {offsets = [0, 96], sizes = [64, 32], strides = [1, 1]} : vector<64x128xf32> to vector<64x32xf32>
      %78 = arith.negf %77 : vector<64x32xf32>
      %79 = math.exp %78 : vector<64x32xf32>
      %cst_36 = arith.constant 1.000000e+00 : f32
      %80 = vector.broadcast %cst_36 : f32 to vector<64x32xf32>
      %81 = arith.addf %80, %79 : vector<64x32xf32>
      %82 = arith.divf %80, %81 : vector<64x32xf32>
      %83 = arith.mulf %74, %15 : vector<64x32xf32>
      %84 = arith.mulf %68, %76 : vector<64x32xf32>
      %85 = arith.addf %83, %84 : vector<64x32xf32>
      %86 = math.tanh %85 : vector<64x32xf32>
      %87 = arith.mulf %82, %86 : vector<64x32xf32>
      %cst_37 = arith.constant 0.000000e+00 : f32
      %88 = vector.broadcast %cst_37 : f32 to vector<64x64xf32>
      %89 = tpu.concatenate %87, %85, %88 in 1 : vector<64x32xf32>, vector<64x32xf32>, vector<64x64xf32> -> vector<64x128xf32>
      %c0_38 = arith.constant 0 : index
      %c0_39 = arith.constant 0 : index
      %90 = vector.load %arg12[%c0_38, %c0_39] : memref<64x128xf32, #tpu.memory_space<vmem>>, vector<64x128xf32>
      tpu.vector_store %arg12[%c0_38, %c0_39], %89 {strides = array<i32>} : memref<64x128xf32, #tpu.memory_space<vmem>>, vector<64x128xf32>,
    } else {
    }
    return
  }
  func.func @transform_0(%arg0: i32, %arg1: i32) -> (i32, i32) {
    %c0_i32 = arith.constant 0 : i32
    return %arg0, %arg1 : i32, i32
  }
  func.func @transform_1(%arg0: i32, %arg1: i32) -> (i32, i32) {
    %c0_i32 = arith.constant 0 : i32
    %c0_i32_0 = arith.constant 0 : i32
    return %arg1, %c0_i32 : i32, i32
  }
  func.func @transform_2(%arg0: i32, %arg1: i32) -> (i32, i32) {
    %c0_i32 = arith.constant 0 : i32
    %c0_i32_0 = arith.constant 0 : i32
    return %arg0, %c0_i32 : i32, i32
  }
  func.func @transform_3(%arg0: i32, %arg1: i32) -> (i32, i32) {
    %c0_i32 = arith.constant 0 : i32
    %c0_i32_0 = arith.constant 0 : i32
    %c0_i32_1 = arith.constant 0 : i32
    return %c0_i32, %c0_i32_0 : i32, i32
  }
  func.func @transform_4(%arg0: i32, %arg1: i32) -> (i32, i32) {
    %c0_i32 = arith.constant 0 : i32
    %c0_i32_0 = arith.constant 0 : i32
    %c0_i32_1 = arith.constant 0 : i32
    return %c0_i32, %c0_i32_0 : i32, i32
  }
  func.func @transform_5(%arg0: i32, %arg1: i32) -> (i32, i32) {
    %c0_i32 = arith.constant 0 : i32
    %c0_i32_0 = arith.constant 0 : i32
    %c0_i32_1 = arith.constant 0 : i32
    return %c0_i32, %c0_i32_0 : i32, i32
  }
  func.func @transform_6(%arg0: i32, %arg1: i32) -> (i32, i32) {
    %c0_i32 = arith.constant 0 : i32
    %c0_i32_0 = arith.constant 0 : i32
    %c0_i32_1 = arith.constant 0 : i32
    return %c0_i32, %c0_i32_0 : i32, i32
  }
  func.func @transform_7(%arg0: i32, %arg1: i32) -> (i32, i32) {
    %c0_i32 = arith.constant 0 : i32
    %c0_i32_0 = arith.constant 0 : i32
    %c0_i32_1 = arith.constant 0 : i32
    return %c0_i32, %c0_i32_0 : i32, i32
  }
  func.func @transform_8(%arg0: i32, %arg1: i32) -> (i32, i32) {
    %c0_i32 = arith.constant 0 : i32
    %c0_i32_0 = arith.constant 0 : i32
    %c0_i32_1 = arith.constant 0 : i32
    return %c0_i32, %c0_i32_0 : i32, i32
  }
  func.func @transform_9(%arg0: i32, %arg1: i32) -> (i32, i32) {
    %c0_i32 = arith.constant 0 : i32
    %c0_i32_0 = arith.constant 0 : i32
    %c0_i32_1 = arith.constant 0 : i32
    return %c0_i32, %c0_i32_0 : i32, i32
  }
  func.func @transform_10(%arg0: i32, %arg1: i32) -> (i32, i32) {
    %c0_i32 = arith.constant 0 : i32
    %c0_i32_0 = arith.constant 0 : i32
    return %arg0, %c0_i32 : i32, i32
  }
}

</mosaic_0001>

<llo_original>
// kernel: tpu_custom_call.1
$region0: #{tpu_custom_call.1}
  #allocation0 [shape = 'u32[]', space=smem, size = 0x4, offset = 0x4, fixed_abs, tag = 'smem constant byte address 0x4 - core index']
  #allocation1 [shape = 'u32[144,128]{1,0:T(1,128)}', space=vmem, size = 0x12000, scoped, tag = 'internal scratch']
  #allocation2 [shape = 'f32[64,8]{1,0:T(8,128)}', space=vmem, size = 0x8000, scoped, tag = 'scratch operand']
  %s0 = inlined_call_operand.vmem [shape: bf16[256,256], index: 0, kind: input, shape index: {}]
  %s1 = inlined_call_operand.vmem [shape: bf16[256,8], index: 1, kind: input, shape index: {}]
  %s2 = inlined_call_operand.vmem [shape: f32[256,72], index: 2, kind: input, shape index: {}]
  %s3 = inlined_call_operand.vmem [shape: bf16[8,24], index: 3, kind: input, shape index: {}]
  %s4 = inlined_call_operand.vmem [shape: bf16[72,24], index: 4, kind: input, shape index: {}]
  %s5 = inlined_call_operand.vmem [shape: f32[1,24], index: 5, kind: input, shape index: {}]
  %s6 = inlined_call_operand.vmem [shape: f32[1,24], index: 6, kind: input, shape index: {}]
  %s7 = inlined_call_operand.vmem [shape: bf16[8,128], index: 7, kind: input, shape index: {}]
  %s8 = inlined_call_operand.vmem [shape: bf16[72,128], index: 8, kind: input, shape index: {}]
  %s9 = inlined_call_operand.vmem [shape: f32[1,128], index: 9, kind: input, shape index: {}]
  %s10 = inlined_call_operand.hbm [shape: f32[256,128], index: 10, kind: output, shape index: {}]
  %s11 = sld [smem:[#allocation0]]
  $region122: #{tpu_custom_call.1} parent=0
    _
  %s13 = ssub.s32 1, %s11
  %s14 = scalar_select 0, %s13, %s11
  $region1: #{tpu_custom_call.1} parent=0
    #allocation3 [shape = 'u8[32768]{0}', space=vmem, size = 0x8000, scoped, tag = 'input window, operand 0']
    #allocation4 [shape = 'u8[65536]{0}', space=vmem, size = 0x10000, scoped, tag = 'output window, operand 0']
    #allocation5 [shape = 's32[2]{0}', space=sflag, size = 0x8, scoped, tag = 'scoped memory for tpu_custom_call.1']
    %15 = vsyncpa [#allocation5], 0
    %s16 = scalar_lea.sflag [#allocation5], 1
    %17 = vsyncpa %s16, 0
    loop: start=0, step=1, limit=10
    $region2: #{tpu_custom_call.1} parent=1 // loop_pre_header
      _
    $region3: #{tpu_custom_call.1} parent=1 // loop_header
      %s19 = sphi 0, %s23
      %p20 = scmp.ge.s32.totalorder %s19, 10
      %s26 = sphi 0, %s38
      %s27 = sphi 0, %s34
      %s28 = sphi 0, %s26
      %s29 = sphi 0, %s27
      %s30 = sphi 0, %s28
      %s31 = sphi 0, %s29
      %s43 = sphi 0, %s45
      %s46 = sphi 0, %s43
      %s47 = sphi 0, %s46
      %s63 = sphi 0, %s47
      %s69 = sphi 0, %s71
      %s72 = sphi 0, %s69
      %s73 = sphi 0, %s72
      %s89 = sphi 0, %s73
      %s95 = sphi 0, %s97
      %s98 = sphi 0, %s95
      %s99 = sphi 0, %s98
      %s115 = sphi 0, %s99
      %s119 = sphi 0, %s119
      %s121 = sphi 0, %s119
      %s122 = sphi 0, %s121
      %s136 = sphi 0, %s122
      %s140 = sphi 0, %s140
      %s142 = sphi 0, %s140
      %s143 = sphi 0, %s142
      %s157 = sphi 0, %s143
      %s161 = sphi 0, %s161
      %s163 = sphi 0, %s161
      %s164 = sphi 0, %s163
      %s178 = sphi 0, %s164
      %s182 = sphi 0, %s182
      %s184 = sphi 0, %s182
      %s185 = sphi 0, %s184
      %s199 = sphi 0, %s185
      %s203 = sphi 0, %s203
      %s205 = sphi 0, %s203
      %s206 = sphi 0, %s205
      %s220 = sphi 0, %s206
      %s224 = sphi 0, %s224
      %s226 = sphi 0, %s224
      %s227 = sphi 0, %s226
      %s241 = sphi 0, %s227
      %s245 = sphi 0, %s245
      %s247 = sphi 0, %s245
      %s248 = sphi 0, %s247
      %s262 = sphi 0, %s248
      %s268 = sphi 0, %s270
      %s271 = sphi 0, %s268
      %s272 = sphi 0, %s271
      %s288 = sphi 0, %s272
    $region4: #{tpu_custom_call.1} parent=1 // loop_header_branch
      %22 = sbr.rel (%p20) target = $region8
    $region5: #{tpu_custom_call.1} parent=1 // loop_body
      %s24 = ssub.s32 %s19, 1
      %s25 = ssub.s32 %s19, 2
      %s32 = sadd.s32 1, %s27
      %p33 = scmp.ge.s32.totalorder %s32, 2
      %s34 = scalar_select %p33, 0, %s32
      %s35 = sadd.s32 1, %s26
      %s36 = scalar_select %p33, %s35, %s26
      %p37 = scmp.ge.s32.totalorder %s36, 4
      %s38 = scalar_select %p37, 0, %s36
      %s39 = ssub.s32 %s26, %s38
      %s40 = ssub.s32 %s27, %s34
      %s41 = sor.u32 %s39, %s40
      %p42 = scmp.eq.s32.totalorder %s41, 0
      %s44 = sadd.s32 %s43, 1
      %s45 = scalar_select %p42, %s43, %s44
      %p48 = pneg %p42
      %p49 = scmp.eq.s32.totalorder %s19, 7
      %p50 = por %p48, %p49
      %p51 = scmp.ne.s32.totalorder %s43, %s46
      %p52 = scmp.eq.s32.totalorder %s19, 0
      %p53 = por %p51, %p52
      %p54 = scmp.ne.s32.totalorder %s43, %s46
      %p55 = scmp.eq.s32.totalorder %s24, 7
      %p56 = por %p54, %p55
      %p57 = scmp.ne.s32.totalorder %s46, %s47
      %p58 = scmp.eq.s32.totalorder %s24, 0
      %p59 = por %p57, %p58
      %p60 = scmp.ne.s32.totalorder %s46, %s47
      %p61 = scmp.eq.s32.totalorder %s25, 7
      %p62 = por %p60, %p61
      %p64 = scmp.ne.s32.totalorder %s47, %s63
      %p65 = scmp.eq.s32.totalorder %s25, 0
      %p66 = por %p64, %p65
      %s67 = ssub.s32 %s27, %s34
      %p68 = scmp.eq.s32.totalorder %s67, 0
      %s70 = sadd.s32 %s69, 1
      %s71 = scalar_select %p68, %s69, %s70
      %p74 = pneg %p68
      %p75 = scmp.eq.s32.totalorder %s19, 7
      %p76 = por %p74, %p75
      %p77 = scmp.ne.s32.totalorder %s69, %s72
      %p78 = scmp.eq.s32.totalorder %s19, 0
      %p79 = por %p77, %p78
      %p80 = scmp.ne.s32.totalorder %s69, %s72
      %p81 = scmp.eq.s32.totalorder %s24, 7
      %p82 = por %p80, %p81
      %p83 = scmp.ne.s32.totalorder %s72, %s73
      %p84 = scmp.eq.s32.totalorder %s24, 0
      %p85 = por %p83, %p84
      %p86 = scmp.ne.s32.totalorder %s72, %s73
      %p87 = scmp.eq.s32.totalorder %s25, 7
      %p88 = por %p86, %p87
      %p90 = scmp.ne.s32.totalorder %s73, %s89
      %p91 = scmp.eq.s32.totalorder %s25, 0
      %p92 = por %p90, %p91
      %s93 = ssub.s32 %s26, %s38
      %p94 = scmp.eq.s32.totalorder %s93, 0
      %s96 = sadd.s32 %s95, 1
      %s97 = scalar_select %p94, %s95, %s96
      %p100 = pneg %p94
      %p101 = scmp.eq.s32.totalorder %s19, 7
      %p102 = por %p100, %p101
      %p103 = scmp.ne.s32.totalorder %s95, %s98
      %p104 = scmp.eq.s32.totalorder %s19, 0
      %p105 = por %p103, %p104
      %p106 = scmp.ne.s32.totalorder %s95, %s98
      %p107 = scmp.eq.s32.totalorder %s24, 7
      %p108 = por %p106, %p107
      %p109 = scmp.ne.s32.totalorder %s98, %s99
      %p110 = scmp.eq.s32.totalorder %s24, 0
      %p111 = por %p109, %p110
      %p112 = scmp.ne.s32.totalorder %s98, %s99
      %p113 = scmp.eq.s32.totalorder %s25, 7
      %p114 = por %p112, %p113
      %p116 = scmp.ne.s32.totalorder %s99, %s115
      %p117 = scmp.eq.s32.totalorder %s25, 0
      %p118 = por %p116, %p117
      %s120 = sadd.s32 %s119, 1
      %p123 = scmp.eq.s32.totalorder %s19, 7
      %p124 = scmp.ne.s32.totalorder %s119, %s121
      %p125 = scmp.eq.s32.totalorder %s19, 0
      %p126 = por %p124, %p125
      %p127 = scmp.ne.s32.totalorder %s119, %s121
      %p128 = scmp.eq.s32.totalorder %s24, 7
      %p129 = por %p127, %p128
      %p130 = scmp.ne.s32.totalorder %s121, %s122
      %p131 = scmp.eq.s32.totalorder %s24, 0
      %p132 = por %p130, %p131
      %p133 = scmp.ne.s32.totalorder %s121, %s122
      %p134 = scmp.eq.s32.totalorder %s25, 7
      %p135 = por %p133, %p134
      %p137 = scmp.ne.s32.totalorder %s122, %s136
      %p138 = scmp.eq.s32.totalorder %s25, 0
      %p139 = por %p137, %p138
      %s141 = sadd.s32 %s140, 1
      %p144 = scmp.eq.s32.totalorder %s19, 7
      %p145 = scmp.ne.s32.totalorder %s140, %s142
      %p146 = scmp.eq.s32.totalorder %s19, 0
      %p147 = por %p145, %p146
      %p148 = scmp.ne.s32.totalorder %s140, %s142
      %p149 = scmp.eq.s32.totalorder %s24, 7
      %p150 = por %p148, %p149
      %p151 = scmp.ne.s32.totalorder %s142, %s143
      %p152 = scmp.eq.s32.totalorder %s24, 0
      %p153 = por %p151, %p152
      %p154 = scmp.ne.s32.totalorder %s142, %s143
      %p155 = scmp.eq.s32.totalorder %s25, 7
      %p156 = por %p154, %p155
      %p158 = scmp.ne.s32.totalorder %s143, %s157
      %p159 = scmp.eq.s32.totalorder %s25, 0
      %p160 = por %p158, %p159
      %s162 = sadd.s32 %s161, 1
      %p165 = scmp.eq.s32.totalorder %s19, 7
      %p166 = scmp.ne.s32.totalorder %s161, %s163
      %p167 = scmp.eq.s32.totalorder %s19, 0
      %p168 = por %p166, %p167
      %p169 = scmp.ne.s32.totalorder %s161, %s163
      %p170 = scmp.eq.s32.totalorder %s24, 7
      %p171 = por %p169, %p170
      %p172 = scmp.ne.s32.totalorder %s163, %s164
      %p173 = scmp.eq.s32.totalorder %s24, 0
      %p174 = por %p172, %p173
      %p175 = scmp.ne.s32.totalorder %s163, %s164
      %p176 = scmp.eq.s32.totalorder %s25, 7
      %p177 = por %p175, %p176
      %p179 = scmp.ne.s32.totalorder %s164, %s178
      %p180 = scmp.eq.s32.totalorder %s25, 0
      %p181 = por %p179, %p180
      %s183 = sadd.s32 %s182, 1
      %p186 = scmp.eq.s32.totalorder %s19, 7
      %p187 = scmp.ne.s32.totalorder %s182, %s184
      %p188 = scmp.eq.s32.totalorder %s19, 0
      %p189 = por %p187, %p188
      %p190 = scmp.ne.s32.totalorder %s182, %s184
      %p191 = scmp.eq.s32.totalorder %s24, 7
      %p192 = por %p190, %p191
      %p193 = scmp.ne.s32.totalorder %s184, %s185
      %p194 = scmp.eq.s32.totalorder %s24, 0
      %p195 = por %p193, %p194
      %p196 = scmp.ne.s32.totalorder %s184, %s185
      %p197 = scmp.eq.s32.totalorder %s25, 7
      %p198 = por %p196, %p197
      %p200 = scmp.ne.s32.totalorder %s185, %s199
      %p201 = scmp.eq.s32.totalorder %s25, 0
      %p202 = por %p200, %p201
      %s204 = sadd.s32 %s203, 1
      %p207 = scmp.eq.s32.totalorder %s19, 7
      %p208 = scmp.ne.s32.totalorder %s203, %s205
      %p209 = scmp.eq.s32.totalorder %s19, 0
      %p210 = por %p208, %p209
      %p211 = scmp.ne.s32.totalorder %s203, %s205
      %p212 = scmp.eq.s32.totalorder %s24, 7
      %p213 = por %p211, %p212
      %p214 = scmp.ne.s32.totalorder %s205, %s206
      %p215 = scmp.eq.s32.totalorder %s24, 0
      %p216 = por %p214, %p215
      %p217 = scmp.ne.s32.totalorder %s205, %s206
      %p218 = scmp.eq.s32.totalorder %s25, 7
      %p219 = por %p217, %p218
      %p221 = scmp.ne.s32.totalorder %s206, %s220
      %p222 = scmp.eq.s32.totalorder %s25, 0
      %p223 = por %p221, %p222
      %s225 = sadd.s32 %s224, 1
      %p228 = scmp.eq.s32.totalorder %s19, 7
      %p229 = scmp.ne.s32.totalorder %s224, %s226
      %p230 = scmp.eq.s32.totalorder %s19, 0
      %p231 = por %p229, %p230
      %p232 = scmp.ne.s32.totalorder %s224, %s226
      %p233 = scmp.eq.s32.totalorder %s24, 7
      %p234 = por %p232, %p233
      %p235 = scmp.ne.s32.totalorder %s226, %s227
      %p236 = scmp.eq.s32.totalorder %s24, 0
      %p237 = por %p235, %p236
      %p238 = scmp.ne.s32.totalorder %s226, %s227
      %p239 = scmp.eq.s32.totalorder %s25, 7
      %p240 = por %p238, %p239
      %p242 = scmp.ne.s32.totalorder %s227, %s241
      %p243 = scmp.eq.s32.totalorder %s25, 0
      %p244 = por %p242, %p243
      %s246 = sadd.s32 %s245, 1
      %p249 = scmp.eq.s32.totalorder %s19, 7
      %p250 = scmp.ne.s32.totalorder %s245, %s247
      %p251 = scmp.eq.s32.totalorder %s19, 0
      %p252 = por %p250, %p251
      %p253 = scmp.ne.s32.totalorder %s245, %s247
      %p254 = scmp.eq.s32.totalorder %s24, 7
      %p255 = por %p253, %p254
      %p256 = scmp.ne.s32.totalorder %s247, %s248
      %p257 = scmp.eq.s32.totalorder %s24, 0
      %p258 = por %p256, %p257
      %p259 = scmp.ne.s32.totalorder %s247, %s248
      %p260 = scmp.eq.s32.totalorder %s25, 7
      %p261 = por %p259, %p260
      %p263 = scmp.ne.s32.totalorder %s248, %s262
      %p264 = scmp.eq.s32.totalorder %s25, 0
      %p265 = por %p263, %p264
      %s266 = ssub.s32 %s26, %s38
      %p267 = scmp.eq.s32.totalorder %s266, 0
      %s269 = sadd.s32 %s268, 1
      %s270 = scalar_select %p267, %s268, %s269
      %p273 = pneg %p267
      %p274 = scmp.eq.s32.totalorder %s19, 7
      %p275 = por %p273, %p274
      %p276 = scmp.ne.s32.totalorder %s268, %s271
      %p277 = scmp.eq.s32.totalorder %s19, 0
      %p278 = por %p276, %p277
      %p279 = scmp.ne.s32.totalorder %s268, %s271
      %p280 = scmp.eq.s32.totalorder %s24, 7
      %p281 = por %p279, %p280
      %p282 = scmp.ne.s32.totalorder %s271, %s272
      %p283 = scmp.eq.s32.totalorder %s24, 0
      %p284 = por %p282, %p283
      %p285 = scmp.ne.s32.totalorder %s271, %s272
      %p286 = scmp.eq.s32.totalorder %s25, 7
      %p287 = por %p285, %p286
      %p289 = scmp.ne.s32.totalorder %s272, %s288
      %p290 = scmp.eq.s32.totalorder %s25, 0
      %p291 = por %p289, %p290
      %p292 = scmp.le.s32.totalorder 1, %s19
      %p293 = scmp.lt.s32.totalorder %s19, 9
      %p294 = pnand %p292, %p293
      %p295 = pneg %p294
      // Predicated region
      $region9: #{tpu_custom_call.1} parent=5 // pred_check
        _
      $region10: #{tpu_custom_call.1} parent=5 // pred_check_branch
        %297 = sbr.rel (%p294) target = $region12
      $region11: #{tpu_custom_call.1} parent=5 // pred_region
        %s298 = ssub.s32 %s19, 1
        // Predicated region
        $region13: #{tpu_custom_call.1} parent=11 // pred_check
          %p299 = pneg %p132
        $region14: #{tpu_custom_call.1} parent=11 // pred_check_branch
          %301 = sbr.rel (%p299) target = $region16
        $region15: #{tpu_custom_call.1} parent=11 // pred_region
          _
        $region16: #{tpu_custom_call.1} parent=11 // pred_fallthru
          _
        // Predicated region
        $region17: #{tpu_custom_call.1} parent=11 // pred_check
          %p302 = pneg %p153
        $region18: #{tpu_custom_call.1} parent=11 // pred_check_branch
          %304 = sbr.rel (%p302) target = $region20
        $region19: #{tpu_custom_call.1} parent=11 // pred_region
          _
        $region20: #{tpu_custom_call.1} parent=11 // pred_fallthru
          _
        // Predicated region
        $region21: #{tpu_custom_call.1} parent=11 // pred_check
          %p305 = pneg %p174
        $region22: #{tpu_custom_call.1} parent=11 // pred_check_branch
          %307 = sbr.rel (%p305) target = $region24
        $region23: #{tpu_custom_call.1} parent=11 // pred_region
          _
        $region24: #{tpu_custom_call.1} parent=11 // pred_fallthru
          _
        // Predicated region
        $region25: #{tpu_custom_call.1} parent=11 // pred_check
          %p308 = pneg %p195
        $region26: #{tpu_custom_call.1} parent=11 // pred_check_branch
          %310 = sbr.rel (%p308) target = $region28
        $region27: #{tpu_custom_call.1} parent=11 // pred_region
          _
        $region28: #{tpu_custom_call.1} parent=11 // pred_fallthru
          _
        // Predicated region
        $region29: #{tpu_custom_call.1} parent=11 // pred_check
          %p311 = pneg %p216
        $region30: #{tpu_custom_call.1} parent=11 // pred_check_branch
          %313 = sbr.rel (%p311) target = $region32
        $region31: #{tpu_custom_call.1} parent=11 // pred_region
          _
        $region32: #{tpu_custom_call.1} parent=11 // pred_fallthru
          _
        // Predicated region
        $region33: #{tpu_custom_call.1} parent=11 // pred_check
          %p314 = pneg %p237
        $region34: #{tpu_custom_call.1} parent=11 // pred_check_branch
          %316 = sbr.rel (%p314) target = $region36
        $region35: #{tpu_custom_call.1} parent=11 // pred_region
          _
        $region36: #{tpu_custom_call.1} parent=11 // pred_fallthru
          _
        // Predicated region
        $region37: #{tpu_custom_call.1} parent=11 // pred_check
          %p317 = pneg %p258
        $region38: #{tpu_custom_call.1} parent=11 // pred_check_branch
          %319 = sbr.rel (%p317) target = $region40
        $region39: #{tpu_custom_call.1} parent=11 // pred_region
          _
        $region40: #{tpu_custom_call.1} parent=11 // pred_fallthru
          _
      $region12: #{tpu_custom_call.1} parent=5 // pred_fallthru
        _
      %p320 = scmp.lt.s32.totalorder %s19, 8
      // Predicated region
      $region41: #{tpu_custom_call.1} parent=5 // pred_check
        %p321 = pneg %p320
      $region42: #{tpu_custom_call.1} parent=5 // pred_check_branch
        %323 = sbr.rel (%p321) target = $region44
      $region43: #{tpu_custom_call.1} parent=5 // pred_region
        // Predicated region
        $region45: #{tpu_custom_call.1} parent=43 // pred_check
          %p324 = pneg %p53
        $region46: #{tpu_custom_call.1} parent=43 // pred_check_branch
          %326 = sbr.rel (%p324) target = $region48
        $region47: #{tpu_custom_call.1} parent=43 // pred_region
          %s327 = sand.u32 %s43, 1
          %s328 = sand.u32 %s43, 1
          %s329 = smul.addr %s328, 32
          %s330 = scalar_lea.vmem [#allocation3], %s329
          %s331 = smul.u32 8, %s26
          %s332 = smul.addr %s331, 2
          %s333 = sadd.s32 %s27, %s332
          %s334 = smul.addr %s333, 4
          %s335 = scalar_lea.vmem %s0, %s334
          // Predicated region
          $region49: #{tpu_custom_call.1} parent=47 // pred_check
            _
          $region50: #{tpu_custom_call.1} parent=47 // pred_check_branch
            %337 = sbr.rel (0) target = $region52
          $region51: #{tpu_custom_call.1} parent=47 // pred_region
            // Predicated region
            $region53: #{tpu_custom_call.1} parent=51 // pred_check
              _
            $region54: #{tpu_custom_call.1} parent=51 // pred_check_branch
              %339 = sbr.rel target = $region56
            $region55: #{tpu_custom_call.1} parent=51 // pred_region
              // Predicated region
              $region68: #{tpu_custom_call.1} parent=55 // pred_check
                _
              $region69: #{tpu_custom_call.1} parent=55 // pred_check_branch
                %368 = sbr.rel (0) target = $region71
              $region70: #{tpu_custom_call.1} parent=55 // pred_region
                loop: start=0, step=1, limit=1
                $region72: #{tpu_custom_call.1} parent=70 // loop_pre_header
                  _
                $region73: #{tpu_custom_call.1} parent=70 // loop_header
                  %s370 = sphi 0, %s374
                  %p371 = scmp.ge.s32.totalorder %s370, 1
                  %s375 = sphi %s335, %s335
                  %s376 = sphi %s330, %s330
                $region74: #{tpu_custom_call.1} parent=70 // loop_header_branch
                  %373 = sbr.rel (%p371) target = $region78
                $region75: #{tpu_custom_call.1} parent=70 // loop_body
                  _
                $region76: #{tpu_custom_call.1} parent=70 // loop_footer
                  %s374 = sadd.s32 1, %s370
                $region77: #{tpu_custom_call.1} parent=70 // loop_footer_branch
                  %369 = sbr.rel target = $region73
                $region78: #{tpu_custom_call.1} parent=70 // loop_exit
                  _
                loop: start=0, step=1, limit=1
                $region79: #{tpu_custom_call.1} parent=70 // loop_pre_header
                  _
                $region80: #{tpu_custom_call.1} parent=70 // loop_header
                  %s379 = sphi 0, %s383
                  %p380 = scmp.ge.s32.totalorder %s379, 1
                  %s384 = sphi %s335, %s335
                  %s385 = sphi %s330, %s330
                $region81: #{tpu_custom_call.1} parent=70 // loop_header_branch
                  %382 = sbr.rel (%p380) target = $region85
                $region82: #{tpu_custom_call.1} parent=70 // loop_body
                  %v386 = vld [vmem:[%s384] sm:$0xf]
                  %387 = vst [vmem:[%s385] sm:$0xf] %v386
                  %v388 = vld [vmem:[%s384 + $0x8] sm:$0xf]
                  %389 = vst [vmem:[%s385 + $0x4] sm:$0xf] %v388
                  %v390 = vld [vmem:[%s384 + $0x10] sm:$0xf]
                  %391 = vst [vmem:[%s385 + $0x8] sm:$0xf] %v390
                  %v392 = vld [vmem:[%s384 + $0x18] sm:$0xf]
                  %393 = vst [vmem:[%s385 + $0xc] sm:$0xf] %v392
                  %v394 = vld [vmem:[%s384 + $0x20] sm:$0xf]
                  %395 = vst [vmem:[%s385 + $0x10] sm:$0xf] %v394
                  %v396 = vld [vmem:[%s384 + $0x28] sm:$0xf]
                  %397 = vst [vmem:[%s385 + $0x14] sm:$0xf] %v396
                  %v398 = vld [vmem:[%s384 + $0x30] sm:$0xf]
                  %399 = vst [vmem:[%s385 + $0x18] sm:$0xf] %v398
                  %v400 = vld [vmem:[%s384 + $0x38] sm:$0xf]
                  %401 = vst [vmem:[%s385 + $0x1c] sm:$0xf] %v400
                $region83: #{tpu_custom_call.1} parent=70 // loop_footer
                  %s383 = sadd.s32 1, %s379
                $region84: #{tpu_custom_call.1} parent=70 // loop_footer_branch
                  %378 = sbr.rel target = $region80
                $region85: #{tpu_custom_call.1} parent=70 // loop_exit
                  _
              $region71: #{tpu_custom_call.1} parent=55 // pred_fallthru
                _
            $region56: #{tpu_custom_call.1} parent=51 // pred_fallthru
              _
            // Predicated region
            $region57: #{tpu_custom_call.1} parent=51 // pred_check
              _
            $region58: #{tpu_custom_call.1} parent=51 // pred_check_branch
              %341 = sbr.rel (0) target = $region60
            $region59: #{tpu_custom_call.1} parent=51 // pred_region
              loop: start=0, step=1, limit=1
              $region61: #{tpu_custom_call.1} parent=59 // loop_pre_header
                _
              $region62: #{tpu_custom_call.1} parent=59 // loop_header
                %s344 = sphi 0, %s348
                %p345 = scmp.ge.s32.totalorder %s344, 1
                %s349 = sphi %s335, %s335
                %s350 = sphi %s330, %s330
              $region63: #{tpu_custom_call.1} parent=59 // loop_header_branch
                %347 = sbr.rel (%p345) target = $region67
              $region64: #{tpu_custom_call.1} parent=59 // loop_body
                %v351 = vld [vmem:[%s349] sm:$0xf]
                %352 = vst [vmem:[%s350] sm:$0xf] %v351
                %v353 = vld [vmem:[%s349 + $0x8] sm:$0xf]
                %354 = vst [vmem:[%s350 + $0x4] sm:$0xf] %v353
                %v355 = vld [vmem:[%s349 + $0x10] sm:$0xf]
                %356 = vst [vmem:[%s350 + $0x8] sm:$0xf] %v355
                %v357 = vld [vmem:[%s349 + $0x18] sm:$0xf]
                %358 = vst [vmem:[%s350 + $0xc] sm:$0xf] %v357
                %v359 = vld [vmem:[%s349 + $0x20] sm:$0xf]
                %360 = vst [vmem:[%s350 + $0x10] sm:$0xf] %v359
                %v361 = vld [vmem:[%s349 + $0x28] sm:$0xf]
                %362 = vst [vmem:[%s350 + $0x14] sm:$0xf] %v361
                %v363 = vld [vmem:[%s349 + $0x30] sm:$0xf]
                %364 = vst [vmem:[%s350 + $0x18] sm:$0xf] %v363
                %v365 = vld [vmem:[%s349 + $0x38] sm:$0xf]
                %366 = vst [vmem:[%s350 + $0x1c] sm:$0xf] %v365
              $region65: #{tpu_custom_call.1} parent=59 // loop_footer
                %s348 = sadd.s32 1, %s344
              $region66: #{tpu_custom_call.1} parent=59 // loop_footer_branch
                %343 = sbr.rel target = $region62
              $region67: #{tpu_custom_call.1} parent=59 // loop_exit
                _
            $region60: #{tpu_custom_call.1} parent=51 // pred_fallthru
              _
          $region52: #{tpu_custom_call.1} parent=47 // pred_fallthru
            _
          %402 = vnop
        $region48: #{tpu_custom_call.1} parent=43 // pred_fallthru
          _
        // Predicated region
        $region86: #{tpu_custom_call.1} parent=43 // pred_check
          %p403 = pneg %p79
        $region87: #{tpu_custom_call.1} parent=43 // pred_check_branch
          %405 = sbr.rel (%p403) target = $region89
        $region88: #{tpu_custom_call.1} parent=43 // pred_region
          %s406 = smul.u32 16, %s27
          %p407 = scmp.lt.s32.totalorder %s406, 31
          %s408 = scalar_select %p407, %s406, 31
          %s409 = smul.addr %s408, 4
          %s410 = scalar_lea.vmem %s1, %s409
          %s411 = smul.u32 16, %s27
        $region89: #{tpu_custom_call.1} parent=43 // pred_fallthru
          _
        // Predicated region
        $region90: #{tpu_custom_call.1} parent=43 // pred_check
          %p412 = pneg %p105
        $region91: #{tpu_custom_call.1} parent=43 // pred_check_branch
          %414 = sbr.rel (%p412) target = $region93
        $region92: #{tpu_custom_call.1} parent=43 // pred_region
          %s415 = smul.u32 8, %s26
          %p416 = scmp.lt.s32.totalorder %s415, 31
          %s417 = scalar_select %p416, %s415, 31
          %s418 = smul.addr %s417, 8
          %s419 = scalar_lea.vmem %s2, %s418
          %s420 = smul.u32 8, %s26
        $region93: #{tpu_custom_call.1} parent=43 // pred_fallthru
          _
      $region44: #{tpu_custom_call.1} parent=5 // pred_fallthru
        _
      %p421 = scmp.le.s32.totalorder 1, %s19
      %p422 = scmp.lt.s32.totalorder %s19, 9
      %p423 = pnand %p421, %p422
      %p424 = pneg %p423
      // Predicated region
      $region94: #{tpu_custom_call.1} parent=5 // pred_check
        _
      $region95: #{tpu_custom_call.1} parent=5 // pred_check_branch
        %426 = sbr.rel (%p423) target = $region97
      $region96: #{tpu_custom_call.1} parent=5 // pred_region
        %s427 = ssub.s32 %s19, 1
        %s428 = sand.u32 %s46, 1
        %s429 = sand.u32 %s46, 1
        %s430 = smul.addr %s429, 32
        %s431 = scalar_lea.vmem [#allocation3], %s430
        // Predicated region
        $region98: #{tpu_custom_call.1} parent=96 // pred_check
          %p432 = pneg %p59
        $region99: #{tpu_custom_call.1} parent=96 // pred_check_branch
          %434 = sbr.rel (%p432) target = $region101
        $region100: #{tpu_custom_call.1} parent=96 // pred_region
          _
        $region101: #{tpu_custom_call.1} parent=96 // pred_fallthru
          _
        %s435 = sand.u32 %s46, 1
        %s436 = sand.u32 %s46, 1
        %s437 = smul.addr %s436, 32
        %s438 = scalar_lea.vmem [#allocation3], %s437
        %p439 = pneg %p59
        %p440 = pneg %p56
        %s441 = smul.u32 16, %s29
        %p442 = scmp.lt.s32.totalorder %s441, 31
        %s443 = scalar_select %p442, %s441, 31
        %s444 = smul.addr %s443, 4
        %s445 = scalar_lea.vmem %s1, %s444
        %p446 = pneg %p85
        %p447 = pneg %p82
        %s448 = smul.u32 8, %s28
        %p449 = scmp.lt.s32.totalorder %s448, 31
        %s450 = scalar_select %p449, %s448, 31
        %s451 = smul.addr %s450, 8
        %s452 = scalar_lea.vmem %s2, %s451
        %p453 = pneg %p111
        %p454 = pneg %p108
        %p455 = pneg %p132
        %p456 = pneg %p129
        %p457 = pneg %p153
        %p458 = pneg %p150
        %p459 = pneg %p174
        %p460 = pneg %p171
        %p461 = pneg %p195
        %p462 = pneg %p192
        %p463 = pneg %p216
        %p464 = pneg %p213
        %p465 = pneg %p237
        %p466 = pneg %p234
        %p467 = pneg %p258
        %p468 = pneg %p255
        %p469 = pneg %p284
        %p470 = pneg %p281
        %s471 = sand.u32 %s271, 1
        %s472 = scalar_lea.sflag [#allocation5], %s471
        %s473 = sand.u32 %s271, 1
        %s474 = smul.addr %s473, 64
        %s475 = scalar_lea.vmem [#allocation4], %s474
        %s476 = smul.u32 8, %s28
        %s477 = smul.u32 16, %s29
        %p478 = scmp.lt.s32.totalorder %s477, 31
        %s479 = scalar_select %p478, %s477, 31
        %s480 = smul.addr %s479, 4
        %s481 = scalar_lea.vmem %s1, %s480
        %s482 = smul.u32 16, %s29
        %s483 = smul.u32 8, %s28
        %p484 = scmp.lt.s32.totalorder %s483, 31
        %s485 = scalar_select %p484, %s483, 31
        %s486 = smul.addr %s485, 8
        %s487 = scalar_lea.vmem %s2, %s486
        %s488 = smul.u32 8, %s28
        %s489 = smul.u32 8, %s28
        %p491 = scmp.eq.s32.totalorder %s29, 0
        // Predicated region
        $region102: #{tpu_custom_call.1} parent=96 // pred_check
          %p492 = pneg %p491
        $region103: #{tpu_custom_call.1} parent=96 // pred_check_branch
          %494 = sbr.rel (%p492) target = $region105
        $region104: #{tpu_custom_call.1} parent=96 // pred_region
          %vm495 = vcmask 64512
          %496 = vst.msk [vmem:[#allocation2] sm:$0xff] %vm495, 0.0
          %497 = vst.msk [vmem:[#allocation2 + $0x8] sm:$0xff] %vm495, 0.0
          %498 = vst.msk [vmem:[#allocation2 + $0x10] sm:$0xff] %vm495, 0.0
          %499 = vst.msk [vmem:[#allocation2 + $0x18] sm:$0xff] %vm495, 0.0
          %500 = vst.msk [vmem:[#allocation2 + $0x20] sm:$0xff] %vm495, 0.0
          %501 = vst.msk [vmem:[#allocation2 + $0x28] sm:$0xff] %vm495, 0.0
          %502 = vst.msk [vmem:[#allocation2 + $0x30] sm:$0xff] %vm495, 0.0
          %503 = vst.msk [vmem:[#allocation2 + $0x38] sm:$0xff] %vm495, 0.0
        $region105: #{tpu_custom_call.1} parent=96 // pred_fallthru
          _
        %v504 = vld [vmem:[#allocation2] sm:$0xff]
        %v505 = vld [vmem:[#allocation2 + $0x8] sm:$0xff]
        %v506 = vld [vmem:[#allocation2 + $0x10] sm:$0xff]
        %v507 = vld [vmem:[#allocation2 + $0x18] sm:$0xff]
        %v508 = vld [vmem:[#allocation2 + $0x20] sm:$0xff]
        %v509 = vld [vmem:[#allocation2 + $0x28] sm:$0xff]
        %v510 = vld [vmem:[#allocation2 + $0x30] sm:$0xff]
        %v511 = vld [vmem:[#allocation2 + $0x38] sm:$0xff]
        %v512 = vld [vmem:[%s431] sm:$0xf]
        %v513 = vld [vmem:[%s431 + $0x4] sm:$0xf]
        %v514 = vld [vmem:[%s431 + $0x8] sm:$0xf]
        %v515 = vld [vmem:[%s431 + $0xc] sm:$0xf]
        %v516 = vld [vmem:[%s431 + $0x10] sm:$0xf]
        %v517 = vld [vmem:[%s431 + $0x14] sm:$0xf]
        %v518 = vld [vmem:[%s431 + $0x18] sm:$0xf]
        %v519 = vld [vmem:[%s431 + $0x1c] sm:$0xf]
        %v520 = vld [vmem:[%s481] sm:$0xf]
        %v521 = vld [vmem:[%s481 + $0x4] sm:$0xf]
        %v522 = vld [vmem:[%s481 + $0x8] sm:$0xf]
        %v523 = vld [vmem:[%s481 + $0xc] sm:$0xf]
        %v524 = vld [vmem:[%s481 + $0x10] sm:$0xf]
        %v525 = vld [vmem:[%s481 + $0x14] sm:$0xf]
        %v526 = vld [vmem:[%s481 + $0x18] sm:$0xf]
        %v527 = vld [vmem:[%s481 + $0x1c] sm:$0xf]
        %v528 = vld [vmem:[%s481 + $0x20] sm:$0xf]
        %v529 = vld [vmem:[%s481 + $0x24] sm:$0xf]
        %v530 = vld [vmem:[%s481 + $0x28] sm:$0xf]
        %v531 = vld [vmem:[%s481 + $0x2c] sm:$0xf]
        %v532 = vld [vmem:[%s481 + $0x30] sm:$0xf]
        %v533 = vld [vmem:[%s481 + $0x34] sm:$0xf]
        %v534 = vld [vmem:[%s481 + $0x38] sm:$0xf]
        %v535 = vld [vmem:[%s481 + $0x3c] sm:$0xf]
        %v544 = vunpack.c.l.b16 %v512
        %v545 = vunpack.c.l.b16 %v513
        %v546 = vunpack.c.l.b16 %v514
        %v547 = vunpack.c.l.b16 %v515
        %v548 = vunpack.c.l.b16 %v516
        %v549 = vunpack.c.l.b16 %v517
        %v550 = vunpack.c.l.b16 %v518
        %v551 = vunpack.c.l.b16 %v519
        %v552 = vpack.c.b16 %v545, %v544
        %v553 = vpack.c.b16 %v547, %v546
        %v554 = vpack.c.b16 %v549, %v548
        %v555 = vpack.c.b16 %v551, %v550
        %v576 = vunpack.c.l.b16 %v520
        %v577 = vunpack.c.l.b16 %v521
        %v578 = vunpack.c.l.b16 %v522
        %v579 = vunpack.c.l.b16 %v523
        %v580 = vunpack.c.l.b16 %v524
        %v581 = vunpack.c.l.b16 %v525
        %v582 = vunpack.c.l.b16 %v526
        %v583 = vunpack.c.l.b16 %v527
        %v584 = vunpack.c.l.b16 %v528
        %v585 = vunpack.c.l.b16 %v529
        %v586 = vunpack.c.l.b16 %v530
        %v587 = vunpack.c.l.b16 %v531
        %v588 = vunpack.c.l.b16 %v532
        %v589 = vunpack.c.l.b16 %v533
        %v590 = vunpack.c.l.b16 %v534
        %v591 = vunpack.c.l.b16 %v535
        %v592 = vpack.c.b16 %v577, %v576
        %v593 = vpack.c.b16 %v579, %v578
        %v594 = vpack.c.b16 %v581, %v580
        %v595 = vpack.c.b16 %v583, %v582
        %v596 = vpack.c.b16 %v585, %v584
        %v597 = vpack.c.b16 %v587, %v586
        %v598 = vpack.c.b16 %v589, %v588
        %v599 = vpack.c.b16 %v591, %v590
        %608 = vmatprep.subr.bf16.mxu0 0
        %609 = vmatpush1.bf16.msra.mxu0 %v592
        %610 = vmatprep.subr.bf16.mxu0 0
        %611 = vmatpush1.bf16.msra.mxu0 %v593
        %612 = vmatprep.subr.bf16.mxu0 0
        %613 = vmatpush1.bf16.msra.mxu0 %v594
        %614 = vmatprep.subr.bf16.mxu0 0
        %615 = vmatpush1.bf16.msra.mxu0 %v595
        %616 = vmatprep.subr.bf16.mxu0 0
        %617 = vmatpush1.bf16.msra.mxu0 %v596
        %618 = vmatprep.subr.bf16.mxu0 0
        %619 = vmatpush1.bf16.msra.mxu0 %v597
        %620 = vmatprep.subr.bf16.mxu0 0
        %621 = vmatpush1.bf16.msra.mxu0 %v598
        %622 = vmatprep.subr.bf16.mxu0 0
        %623 = vmatpush1.bf16.msra.mxu0 %v599
        %624 = vmatprep.subr.bf16.mxu0 0
        %625 = vmatpush1.bf16.msra.mxu0 0
        %626 = vmatprep.subr.bf16.mxu0 0
        %627 = vmatpush1.bf16.msra.mxu0 0
        %628 = vmatprep.subr.bf16.mxu0 0
        %629 = vmatpush1.bf16.msra.mxu0 0
        %630 = vmatprep.subr.bf16.mxu0 0
        %631 = vmatpush1.bf16.msra.mxu0 0
        %632 = vmatprep.subr.bf16.mxu0 0
        %633 = vmatpush1.bf16.msra.mxu0 0
        %634 = vmatprep.subr.bf16.mxu0 0
        %635 = vmatpush1.bf16.msra.mxu0 0
        %636 = vmatprep.subr.bf16.mxu0 0
        %637 = vmatpush1.bf16.msra.mxu0 0
        %638 = vmatprep.subr.bf16.mxu0 0
        %639 = vmatpush1.bf16.msra.mxu0 0
        %640 = vmatprep.mubr.bf16.mxu0 0
        %641 = vmatmul.mubr.bf16.gmra.mrb[0].mxu0 %v552
        %v642 = vpop.f32.mrb[0].mxu0
        %v643 = vadd.f32 0.0, %v642
        %v644 = vpop.f32.mrb[0].mxu0
        %v645 = vpop.f32.mrb[0].mxu0
        %v646 = vadd.f32 0.0, %v645
        %v647 = vpop.f32.mrb[0].mxu0
        %648 = vmatprep.mubr.bf16.mxu0 0
        %649 = vmatmul.mubr.bf16.gmra.mrb[0].mxu0 %v553
        %v650 = vpop.f32.mrb[0].mxu0
        %v651 = vadd.f32 0.0, %v650
        %v652 = vpop.f32.mrb[0].mxu0
        %v653 = vpop.f32.mrb[0].mxu0
        %v654 = vadd.f32 0.0, %v653
        %v655 = vpop.f32.mrb[0].mxu0
        %656 = vmatprep.mubr.bf16.mxu0 0
        %657 = vmatmul.mubr.bf16.gmra.mrb[0].mxu0 %v554
        %v658 = vpop.f32.mrb[0].mxu0
        %v659 = vadd.f32 0.0, %v658
        %v660 = vpop.f32.mrb[0].mxu0
        %v661 = vpop.f32.mrb[0].mxu0
        %v662 = vadd.f32 0.0, %v661
        %v663 = vpop.f32.mrb[0].mxu0
        %664 = vmatprep.mubr.bf16.mxu0 0
        %665 = vmatmul.mubr.bf16.gmra.mrb[0].mxu0 %v555
        %v666 = vpop.f32.mrb[0].mxu0
        %v667 = vadd.f32 0.0, %v666
        %v668 = vpop.f32.mrb[0].mxu0
        %v669 = vpop.f32.mrb[0].mxu0
        %v670 = vadd.f32 0.0, %v669
        %v671 = vpop.f32.mrb[0].mxu0
        %672 = vdwg.mxu0
        %v673 = vadd.f32 %v504, %v643
        %v674 = vadd.f32 %v505, %v646
        %v675 = vadd.f32 %v506, %v651
        %v676 = vadd.f32 %v507, %v654
        %v677 = vadd.f32 %v508, %v659
        %v678 = vadd.f32 %v509, %v662
        %v679 = vadd.f32 %v510, %v667
        %v680 = vadd.f32 %v511, %v670
        %vm681 = vcmask 64512
        %682 = vst.msk [vmem:[#allocation2] sm:$0xff] %vm681, %v673
        %683 = vst.msk [vmem:[#allocation2 + $0x8] sm:$0xff] %vm681, %v674
        %684 = vst.msk [vmem:[#allocation2 + $0x10] sm:$0xff] %vm681, %v675
        %685 = vst.msk [vmem:[#allocation2 + $0x18] sm:$0xff] %vm681, %v676
        %686 = vst.msk [vmem:[#allocation2 + $0x20] sm:$0xff] %vm681, %v677
        %687 = vst.msk [vmem:[#allocation2 + $0x28] sm:$0xff] %vm681, %v678
        %688 = vst.msk [vmem:[#allocation2 + $0x30] sm:$0xff] %vm681, %v679
        %689 = vst.msk [vmem:[#allocation2 + $0x38] sm:$0xff] %vm681, %v680
        %p690 = scmp.eq.s32.totalorder %s29, 1
        // Predicated region
        $region106: #{tpu_custom_call.1} parent=96 // pred_check
          %p691 = pneg %p690
        $region107: #{tpu_custom_call.1} parent=96 // pred_check_branch
          %693 = sbr.rel (%p691) target = $region109
        $region108: #{tpu_custom_call.1} parent=96 // pred_region
          %v694 = vld [vmem:[%s487] sm:$0xff]
          %v695 = vld [vmem:[%s487 + $0x8] sm:$0xff]
          %v696 = vld [vmem:[%s487 + $0x10] sm:$0xff]
          %v697 = vld [vmem:[%s487 + $0x18] sm:$0xff]
          %v698 = vld [vmem:[%s487 + $0x20] sm:$0xff]
          %v699 = vld [vmem:[%s487 + $0x28] sm:$0xff]
          %v700 = vld [vmem:[%s487 + $0x30] sm:$0xff]
          %v701 = vld [vmem:[%s487 + $0x38] sm:$0xff]
          %v702 = vpack.c.bf16 %v695, %v694
          %v703 = vpack.c.bf16 %v697, %v696
          %v704 = vpack.c.bf16 %v699, %v698
          %v705 = vpack.c.bf16 %v701, %v700
          %v706 = vld [vmem:[#allocation2] sm:$0xff]
          %v707 = vld [vmem:[#allocation2 + $0x8] sm:$0xff]
          %v708 = vld [vmem:[#allocation2 + $0x10] sm:$0xff]
          %v709 = vld [vmem:[#allocation2 + $0x18] sm:$0xff]
          %v710 = vld [vmem:[#allocation2 + $0x20] sm:$0xff]
          %v711 = vld [vmem:[#allocation2 + $0x28] sm:$0xff]
          %v712 = vld [vmem:[#allocation2 + $0x30] sm:$0xff]
          %v713 = vld [vmem:[#allocation2 + $0x38] sm:$0xff]
          %v714 = vpack.c.bf16 %v707, %v706
          %v715 = vpack.c.bf16 %v709, %v708
          %v716 = vpack.c.bf16 %v711, %v710
          %v717 = vpack.c.bf16 %v713, %v712
          %v718 = vld [vmem:[%s3] sm:$0xf]
          %v719 = vld [vmem:[%s5] sm:$0x1]
          %v721 = vlaneseq
          %v722 = vshrl.u32 %v721, 7
          %v723 = vsub.s32 0, %v722
          %v724 = vrot.slane %v719, %v723
          %v727 = vsel %vm681, %v714, 0
          %v730 = vsel %vm681, %v715, 0
          %v733 = vsel %vm681, %v716, 0
          %v736 = vsel %vm681, %v717, 0
          %vm738 = vcmask 1043456
          %v740 = vsel %vm738, %v718, 0
          %742 = vmatprep.subr.bf16.mxu0 0
          %743 = vmatpush1.bf16.msra.mxu0 %v740
          %744 = vmatprep.subr.bf16.mxu0 0
          %745 = vmatpush1.bf16.msra.mxu0 0
          %746 = vmatprep.subr.bf16.mxu0 0
          %747 = vmatpush1.bf16.msra.mxu0 0
          %748 = vmatprep.subr.bf16.mxu0 0
          %749 = vmatpush1.bf16.msra.mxu0 0
          %750 = vmatprep.subr.bf16.mxu0 0
          %751 = vmatpush1.bf16.msra.mxu0 0
          %752 = vmatprep.subr.bf16.mxu0 0
          %753 = vmatpush1.bf16.msra.mxu0 0
          %754 = vmatprep.subr.bf16.mxu0 0
          %755 = vmatpush1.bf16.msra.mxu0 0
          %756 = vmatprep.subr.bf16.mxu0 0
          %757 = vmatpush1.bf16.msra.mxu0 0
          %758 = vmatprep.subr.bf16.mxu0 0
          %759 = vmatpush1.bf16.msra.mxu0 0
          %760 = vmatprep.subr.bf16.mxu0 0
          %761 = vmatpush1.bf16.msra.mxu0 0
          %762 = vmatprep.subr.bf16.mxu0 0
          %763 = vmatpush1.bf16.msra.mxu0 0
          %764 = vmatprep.subr.bf16.mxu0 0
          %765 = vmatpush1.bf16.msra.mxu0 0
          %766 = vmatprep.subr.bf16.mxu0 0
          %767 = vmatpush1.bf16.msra.mxu0 0
          %768 = vmatprep.subr.bf16.mxu0 0
          %769 = vmatpush1.bf16.msra.mxu0 0
          %770 = vmatprep.subr.bf16.mxu0 0
          %771 = vmatpush1.bf16.msra.mxu0 0
          %772 = vmatprep.subr.bf16.mxu0 0
          %773 = vmatpush1.bf16.msra.mxu0 0
          %774 = vmatprep.mubr.bf16.mxu0 0
          %775 = vmatmul.mubr.bf16.gmra.mrb[0].mxu0 %v727
          %v776 = vpop.f32.mrb[0].mxu0
          %v777 = vadd.f32 %v724, %v776
          %v778 = vpop.f32.mrb[0].mxu0
          %v779 = vpop.f32.mrb[0].mxu0
          %v780 = vadd.f32 %v724, %v779
          %v781 = vpop.f32.mrb[0].mxu0
          %782 = vmatprep.mubr.bf16.mxu0 0
          %783 = vmatmul.mubr.bf16.gmra.mrb[0].mxu0 %v730
          %v784 = vpop.f32.mrb[0].mxu0
          %v785 = vadd.f32 %v724, %v784
          %v786 = vpop.f32.mrb[0].mxu0
          %v787 = vpop.f32.mrb[0].mxu0
          %v788 = vadd.f32 %v724, %v787
          %v789 = vpop.f32.mrb[0].mxu0
          %790 = vmatprep.mubr.bf16.mxu0 0
          %791 = vmatmul.mubr.bf16.gmra.mrb[0].mxu0 %v733
          %v792 = vpop.f32.mrb[0].mxu0
          %v793 = vadd.f32 %v724, %v792
          %v794 = vpop.f32.mrb[0].mxu0
          %v795 = vpop.f32.mrb[0].mxu0
          %v796 = vadd.f32 %v724, %v795
          %v797 = vpop.f32.mrb[0].mxu0
          %798 = vmatprep.mubr.bf16.mxu0 0
          %799 = vmatmul.mubr.bf16.gmra.mrb[0].mxu0 %v736
          %v800 = vpop.f32.mrb[0].mxu0
          %v801 = vadd.f32 %v724, %v800
          %v802 = vpop.f32.mrb[0].mxu0
          %v803 = vpop.f32.mrb[0].mxu0
          %v804 = vadd.f32 %v724, %v803
          %v805 = vpop.f32.mrb[0].mxu0
          %806 = vdwg.mxu0
          %v807 = vld [vmem:[%s4] sm:$0xf]
          %v808 = vld [vmem:[%s4 + $0x4] sm:$0xf]
          %v809 = vld [vmem:[%s4 + $0x8] sm:$0xf]
          %v810 = vld [vmem:[%s4 + $0xc] sm:$0xf]
          %v811 = vld [vmem:[%s4 + $0x10] sm:$0xf]
          %v812 = vld [vmem:[%s4 + $0x14] sm:$0xf]
          %v813 = vld [vmem:[%s4 + $0x18] sm:$0xf]
          %v814 = vld [vmem:[%s4 + $0x1c] sm:$0xf]
          %v815 = vld [vmem:[%s4 + $0x20] sm:$0xf]
          %v816 = vld [vmem:[%s6] sm:$0x1]
          %v818 = vlaneseq
          %v819 = vshrl.u32 %v818, 7
          %v820 = vsub.s32 0, %v819
          %v821 = vrot.slane %v816, %v820
          %v832 = vunpack.c.l.b16 %v807
          %v833 = vunpack.c.l.b16 %v808
          %v834 = vunpack.c.l.b16 %v809
          %v835 = vunpack.c.l.b16 %v810
          %v836 = vunpack.c.l.b16 %v811
          %v837 = vunpack.c.l.b16 %v812
          %v838 = vunpack.c.l.b16 %v813
          %v839 = vunpack.c.l.b16 %v814
          %v840 = vunpack.c.l.b16 %v815
          %v841 = vpack.c.b16 %v833, %v832
          %v842 = vpack.c.b16 %v835, %v834
          %v843 = vpack.c.b16 %v837, %v836
          %v844 = vpack.c.b16 %v839, %v838
          %v845 = vpack.c.b16 %v840, %v840
          %vm850 = vcmask 588800
          %v852 = vsel %vm850, %v702, 0
          %v855 = vsel %vm850, %v703, 0
          %v858 = vsel %vm850, %v704, 0
          %v861 = vsel %vm850, %v705, 0
          %v864 = vsel %vm738, %v845, 0
          %866 = vmatprep.subr.bf16.mxu0 0
          %867 = vmatpush1.bf16.msra.mxu0 %v841
          %868 = vmatprep.subr.bf16.mxu0 0
          %869 = vmatpush1.bf16.msra.mxu0 %v842
          %870 = vmatprep.subr.bf16.mxu0 0
          %871 = vmatpush1.bf16.msra.mxu0 %v843
          %872 = vmatprep.subr.bf16.mxu0 0
          %873 = vmatpush1.bf16.msra.mxu0 %v844
          %874 = vmatprep.subr.bf16.mxu0 0
          %875 = vmatpush1.bf16.msra.mxu0 %v864
          %876 = vmatprep.subr.bf16.mxu0 0
          %877 = vmatpush1.bf16.msra.mxu0 0
          %878 = vmatprep.subr.bf16.mxu0 0
          %879 = vmatpush1.bf16.msra.mxu0 0
          %880 = vmatprep.subr.bf16.mxu0 0
          %881 = vmatpush1.bf16.msra.mxu0 0
          %882 = vmatprep.subr.bf16.mxu0 0
          %883 = vmatpush1.bf16.msra.mxu0 0
          %884 = vmatprep.subr.bf16.mxu0 0
          %885 = vmatpush1.bf16.msra.mxu0 0
          %886 = vmatprep.subr.bf16.mxu0 0
          %887 = vmatpush1.bf16.msra.mxu0 0
          %888 = vmatprep.subr.bf16.mxu0 0
          %889 = vmatpush1.bf16.msra.mxu0 0
          %890 = vmatprep.subr.bf16.mxu0 0
          %891 = vmatpush1.bf16.msra.mxu0 0
          %892 = vmatprep.subr.bf16.mxu0 0
          %893 = vmatpush1.bf16.msra.mxu0 0
          %894 = vmatprep.subr.bf16.mxu0 0
          %895 = vmatpush1.bf16.msra.mxu0 0
          %896 = vmatprep.subr.bf16.mxu0 0
          %897 = vmatpush1.bf16.msra.mxu0 0
          %898 = vmatprep.mubr.bf16.mxu0 0
          %899 = vmatmul.mubr.bf16.gmra.mrb[0].mxu0 %v852
          %v900 = vpop.f32.mrb[0].mxu0
          %v901 = vadd.f32 %v821, %v900
          %v902 = vpop.f32.mrb[0].mxu0
          %v903 = vpop.f32.mrb[0].mxu0
          %v904 = vadd.f32 %v821, %v903
          %v905 = vpop.f32.mrb[0].mxu0
          %906 = vmatprep.mubr.bf16.mxu0 0
          %907 = vmatmul.mubr.bf16.gmra.mrb[0].mxu0 %v855
          %v908 = vpop.f32.mrb[0].mxu0
          %v909 = vadd.f32 %v821, %v908
          %v910 = vpop.f32.mrb[0].mxu0
          %v911 = vpop.f32.mrb[0].mxu0
          %v912 = vadd.f32 %v821, %v911
          %v913 = vpop.f32.mrb[0].mxu0
          %914 = vmatprep.mubr.bf16.mxu0 0
          %915 = vmatmul.mubr.bf16.gmra.mrb[0].mxu0 %v858
          %v916 = vpop.f32.mrb[0].mxu0
          %v917 = vadd.f32 %v821, %v916
          %v918 = vpop.f32.mrb[0].mxu0
          %v919 = vpop.f32.mrb[0].mxu0
          %v920 = vadd.f32 %v821, %v919
          %v921 = vpop.f32.mrb[0].mxu0
          %922 = vmatprep.mubr.bf16.mxu0 0
          %923 = vmatmul.mubr.bf16.gmra.mrb[0].mxu0 %v861
          %v924 = vpop.f32.mrb[0].mxu0
          %v925 = vadd.f32 %v821, %v924
          %v926 = vpop.f32.mrb[0].mxu0
          %v927 = vpop.f32.mrb[0].mxu0
          %v928 = vadd.f32 %v821, %v927
          %v929 = vpop.f32.mrb[0].mxu0
          %930 = vdwg.mxu0
          %v931 = vadd.f32 %v777, %v901
          %v932 = vadd.f32 %v780, %v904
          %v933 = vadd.f32 %v785, %v909
          %v934 = vadd.f32 %v788, %v912
          %v935 = vadd.f32 %v793, %v917
          %v936 = vadd.f32 %v796, %v920
          %v937 = vadd.f32 %v801, %v925
          %v938 = vadd.f32 %v804, %v928
          %v939 = vxor.u32 %v931, 2147483648
          %v940 = vxor.u32 %v932, 2147483648
          %v941 = vxor.u32 %v933, 2147483648
          %v942 = vxor.u32 %v934, 2147483648
          %v943 = vxor.u32 %v935, 2147483648
          %v944 = vxor.u32 %v936, 2147483648
          %v945 = vxor.u32 %v937, 2147483648
          %v946 = vxor.u32 %v938, 2147483648
          %v947 = vmul.f32 %v939, 1.442695
          %v948 = vpow.pop %v947
          %v949 = vmul.f32 %v940, 1.442695
          %v950 = vpow.pop %v949
          %v951 = vmul.f32 %v941, 1.442695
          %v952 = vpow.pop %v951
          %v953 = vmul.f32 %v942, 1.442695
          %v954 = vpow.pop %v953
          %v955 = vmul.f32 %v943, 1.442695
          %v956 = vpow.pop %v955
          %v957 = vmul.f32 %v944, 1.442695
          %v958 = vpow.pop %v957
          %v959 = vmul.f32 %v945, 1.442695
          %v960 = vpow.pop %v959
          %v961 = vmul.f32 %v946, 1.442695
          %v962 = vpow.pop %v961
          %v963 = vadd.f32 %v948, 1.0
          %v964 = vadd.f32 %v950, 1.0
          %v965 = vadd.f32 %v952, 1.0
          %v966 = vadd.f32 %v954, 1.0
          %v967 = vadd.f32 %v956, 1.0
          %v968 = vadd.f32 %v958, 1.0
          %v969 = vadd.f32 %v960, 1.0
          %v970 = vadd.f32 %v962, 1.0
          %v971 = vrcp.pop %v963
          %v972 = vmul.f32 1.0, %v971
          %v973 = vrcp.pop %v964
          %v974 = vmul.f32 1.0, %v973
          %v975 = vrcp.pop %v965
          %v976 = vmul.f32 1.0, %v975
          %v977 = vrcp.pop %v966
          %v978 = vmul.f32 1.0, %v977
          %v979 = vrcp.pop %v967
          %v980 = vmul.f32 1.0, %v979
          %v981 = vrcp.pop %v968
          %v982 = vmul.f32 1.0, %v981
          %v983 = vrcp.pop %v969
          %v984 = vmul.f32 1.0, %v983
          %v985 = vrcp.pop %v970
          %v986 = vmul.f32 1.0, %v985
          %995 = vrot.lane.b32.xlu0 %v901, 112
          %v996 = vpop.permute.xlu0 %995
          %997 = vrot.lane.b32.xlu0 %v904, 112
          %v998 = vpop.permute.xlu0 %997
          %999 = vrot.lane.b32.xlu0 %v909, 112
          %v1000 = vpop.permute.xlu0 %999
          %1001 = vrot.lane.b32.xlu0 %v912, 112
          %v1002 = vpop.permute.xlu0 %1001
          %1003 = vrot.lane.b32.xlu0 %v917, 112
          %v1004 = vpop.permute.xlu0 %1003
          %1005 = vrot.lane.b32.xlu0 %v920, 112
          %v1006 = vpop.permute.xlu0 %1005
          %1007 = vrot.lane.b32.xlu0 %v925, 112
          %v1008 = vpop.permute.xlu0 %1007
          %1009 = vrot.lane.b32.xlu0 %v928, 112
          %v1010 = vpop.permute.xlu0 %1009
          %v1019 = vmul.f32 %v972, %v996
          %v1020 = vmul.f32 %v974, %v998
          %v1021 = vmul.f32 %v976, %v1000
          %v1022 = vmul.f32 %v978, %v1002
          %v1023 = vmul.f32 %v980, %v1004
          %v1024 = vmul.f32 %v982, %v1006
          %v1025 = vmul.f32 %v984, %v1008
          %v1026 = vmul.f32 %v986, %v1010
          %1035 = vrot.lane.b32.xlu0 %v1019, 16
          %v1036 = vpop.permute.xlu0 %1035
          %1037 = vrot.lane.b32.xlu0 %v1020, 16
          %v1038 = vpop.permute.xlu0 %1037
          %1039 = vrot.lane.b32.xlu0 %v1021, 16
          %v1040 = vpop.permute.xlu0 %1039
          %1041 = vrot.lane.b32.xlu0 %v1022, 16
          %v1042 = vpop.permute.xlu0 %1041
          %1043 = vrot.lane.b32.xlu0 %v1023, 16
          %v1044 = vpop.permute.xlu0 %1043
          %1045 = vrot.lane.b32.xlu0 %v1024, 16
          %v1046 = vpop.permute.xlu0 %1045
          %1047 = vrot.lane.b32.xlu0 %v1025, 16
          %v1048 = vpop.permute.xlu0 %1047
          %1049 = vrot.lane.b32.xlu0 %v1026, 16
          %v1050 = vpop.permute.xlu0 %1049
          %v1059 = vadd.f32 %v777, %v1036
          %v1060 = vadd.f32 %v780, %v1038
          %v1061 = vadd.f32 %v785, %v1040
          %v1062 = vadd.f32 %v788, %v1042
          %v1063 = vadd.f32 %v793, %v1044
          %v1064 = vadd.f32 %v796, %v1046
          %v1065 = vadd.f32 %v801, %v1048
          %v1066 = vadd.f32 %v804, %v1050
          %v1067 = vtanh.pop %v1059
          %v1068 = vtanh.pop %v1060
          %v1069 = vtanh.pop %v1061
          %v1070 = vtanh.pop %v1062
          %v1071 = vtanh.pop %v1063
          %v1072 = vtanh.pop %v1064
          %v1073 = vtanh.pop %v1065
          %v1074 = vtanh.pop %v1066
          %v1075 = vsub.f32 1.0, %v972
          %v1076 = vsub.f32 1.0, %v974
          %v1077 = vsub.f32 1.0, %v976
          %v1078 = vsub.f32 1.0, %v978
          %v1079 = vsub.f32 1.0, %v980
          %v1080 = vsub.f32 1.0, %v982
          %v1081 = vsub.f32 1.0, %v984
          %v1082 = vsub.f32 1.0, %v986
          %1091 = vrot.lane.b32.xlu0 %v1067, 120
          %v1092 = vpop.permute.xlu0 %1091
          %1093 = vrot.lane.b32.xlu0 %v1068, 120
          %v1094 = vpop.permute.xlu0 %1093
          %1095 = vrot.lane.b32.xlu0 %v1069, 120
          %v1096 = vpop.permute.xlu0 %1095
          %1097 = vrot.lane.b32.xlu0 %v1070, 120
          %v1098 = vpop.permute.xlu0 %1097
          %1099 = vrot.lane.b32.xlu0 %v1071, 120
          %v1100 = vpop.permute.xlu0 %1099
          %1101 = vrot.lane.b32.xlu0 %v1072, 120
          %v1102 = vpop.permute.xlu0 %1101
          %1103 = vrot.lane.b32.xlu0 %v1073, 120
          %v1104 = vpop.permute.xlu0 %1103
          %1105 = vrot.lane.b32.xlu0 %v1074, 120
          %v1106 = vpop.permute.xlu0 %1105
          %v1115 = vmul.f32 %v1075, %v1092
          %v1116 = vmul.f32 %v1076, %v1094
          %v1117 = vmul.f32 %v1077, %v1096
          %v1118 = vmul.f32 %v1078, %v1098
          %v1119 = vmul.f32 %v1079, %v1100
          %v1120 = vmul.f32 %v1080, %v1102
          %v1121 = vmul.f32 %v1081, %v1104
          %v1122 = vmul.f32 %v1082, %v1106
          %1131 = vrot.lane.b32.xlu0 %v694, 8
          %v1132 = vpop.permute.xlu0 %1131
          %1133 = vrot.lane.b32.xlu0 %v695, 8
          %v1134 = vpop.permute.xlu0 %1133
          %1135 = vrot.lane.b32.xlu0 %v696, 8
          %v1136 = vpop.permute.xlu0 %1135
          %1137 = vrot.lane.b32.xlu0 %v697, 8
          %v1138 = vpop.permute.xlu0 %1137
          %1139 = vrot.lane.b32.xlu0 %v698, 8
          %v1140 = vpop.permute.xlu0 %1139
          %1141 = vrot.lane.b32.xlu0 %v699, 8
          %v1142 = vpop.permute.xlu0 %1141
          %1143 = vrot.lane.b32.xlu0 %v700, 8
          %v1144 = vpop.permute.xlu0 %1143
          %1145 = vrot.lane.b32.xlu0 %v701, 8
          %v1146 = vpop.permute.xlu0 %1145
          %v1155 = vmul.f32 %v972, %v1132
          %v1156 = vmul.f32 %v974, %v1134
          %v1157 = vmul.f32 %v976, %v1136
          %v1158 = vmul.f32 %v978, %v1138
          %v1159 = vmul.f32 %v980, %v1140
          %v1160 = vmul.f32 %v982, %v1142
          %v1161 = vmul.f32 %v984, %v1144
          %v1162 = vmul.f32 %v986, %v1146
          %v1163 = vadd.f32 %v1115, %v1155
          %v1164 = vadd.f32 %v1116, %v1156
          %v1165 = vadd.f32 %v1117, %v1157
          %v1166 = vadd.f32 %v1118, %v1158
          %v1167 = vadd.f32 %v1119, %v1159
          %v1168 = vadd.f32 %v1120, %v1160
          %v1169 = vadd.f32 %v1121, %v1161
          %v1170 = vadd.f32 %v1122, %v1162
          %v1171 = vpack.c.bf16 %v1164, %v1163
          %v1172 = vpack.c.bf16 %v1166, %v1165
          %v1173 = vpack.c.bf16 %v1168, %v1167
          %v1174 = vpack.c.bf16 %v1170, %v1169
          %v1175 = vld [vmem:[%s7] sm:$0xf]
          %v1176 = vld [vmem:[%s8] sm:$0xf]
          %v1177 = vld [vmem:[%s8 + $0x4] sm:$0xf]
          %v1178 = vld [vmem:[%s8 + $0x8] sm:$0xf]
          %v1179 = vld [vmem:[%s8 + $0xc] sm:$0xf]
          %v1180 = vld [vmem:[%s8 + $0x10] sm:$0xf]
          %v1181 = vld [vmem:[%s8 + $0x14] sm:$0xf]
          %v1182 = vld [vmem:[%s8 + $0x18] sm:$0xf]
          %v1183 = vld [vmem:[%s8 + $0x1c] sm:$0xf]
          %v1184 = vld [vmem:[%s8 + $0x20] sm:$0xf]
          %v1194 = vunpack.c.l.b16 %v1176
          %v1195 = vunpack.c.l.b16 %v1177
          %v1196 = vunpack.c.l.b16 %v1178
          %v1197 = vunpack.c.l.b16 %v1179
          %v1198 = vunpack.c.l.b16 %v1180
          %v1199 = vunpack.c.l.b16 %v1181
          %v1200 = vunpack.c.l.b16 %v1182
          %v1201 = vunpack.c.l.b16 %v1183
          %v1202 = vunpack.c.l.b16 %v1184
          %v1203 = vpack.c.b16 %v1195, %v1194
          %v1204 = vpack.c.b16 %v1197, %v1196
          %v1205 = vpack.c.b16 %v1199, %v1198
          %v1206 = vpack.c.b16 %v1201, %v1200
          %v1207 = vpack.c.b16 %v1202, %v1202
          %v1213 = vsel %vm738, %v1207, 0
          %1215 = vmatprep.subr.bf16.mxu0 0
          %1216 = vmatpush1.bf16.msra.mxu0 %v1203
          %1217 = vmatprep.subr.bf16.mxu0 0
          %1218 = vmatpush1.bf16.msra.mxu0 %v1204
          %1219 = vmatprep.subr.bf16.mxu0 0
          %1220 = vmatpush1.bf16.msra.mxu0 %v1205
          %1221 = vmatprep.subr.bf16.mxu0 0
          %1222 = vmatpush1.bf16.msra.mxu0 %v1206
          %1223 = vmatprep.subr.bf16.mxu0 0
          %1224 = vmatpush1.bf16.msra.mxu0 %v1213
          %1225 = vmatprep.subr.bf16.mxu0 0
          %1226 = vmatpush1.bf16.msra.mxu0 0
          %1227 = vmatprep.subr.bf16.mxu0 0
          %1228 = vmatpush1.bf16.msra.mxu0 0
          %1229 = vmatprep.subr.bf16.mxu0 0
          %1230 = vmatpush1.bf16.msra.mxu0 0
          %1231 = vmatprep.subr.bf16.mxu0 0
          %1232 = vmatpush1.bf16.msra.mxu0 0
          %1233 = vmatprep.subr.bf16.mxu0 0
          %1234 = vmatpush1.bf16.msra.mxu0 0
          %1235 = vmatprep.subr.bf16.mxu0 0
          %1236 = vmatpush1.bf16.msra.mxu0 0
          %1237 = vmatprep.subr.bf16.mxu0 0
          %1238 = vmatpush1.bf16.msra.mxu0 0
          %1239 = vmatprep.subr.bf16.mxu0 0
          %1240 = vmatpush1.bf16.msra.mxu0 0
          %1241 = vmatprep.subr.bf16.mxu0 0
          %1242 = vmatpush1.bf16.msra.mxu0 0
          %1243 = vmatprep.subr.bf16.mxu0 0
          %1244 = vmatpush1.bf16.msra.mxu0 0
          %1245 = vmatprep.subr.bf16.mxu0 0
          %1246 = vmatpush1.bf16.msra.mxu0 0
          %1247 = vmatprep.mubr.bf16.mxu0 0
          %1248 = vmatmul.mubr.bf16.gmra.mrb[0].mxu0 %v852
          %v1249 = vpop.f32.mrb[0].mxu0
          %v1250 = vadd.f32 0.0, %v1249
          %v1251 = vpop.f32.mrb[0].mxu0
          %v1252 = vpop.f32.mrb[0].mxu0
          %v1253 = vadd.f32 0.0, %v1252
          %v1254 = vpop.f32.mrb[0].mxu0
          %1255 = vmatprep.mubr.bf16.mxu0 0
          %1256 = vmatmul.mubr.bf16.gmra.mrb[0].mxu0 %v855
          %v1257 = vpop.f32.mrb[0].mxu0
          %v1258 = vadd.f32 0.0, %v1257
          %v1259 = vpop.f32.mrb[0].mxu0
          %v1260 = vpop.f32.mrb[0].mxu0
          %v1261 = vadd.f32 0.0, %v1260
          %v1262 = vpop.f32.mrb[0].mxu0
          %1263 = vmatprep.mubr.bf16.mxu0 0
          %1264 = vmatmul.mubr.bf16.gmra.mrb[0].mxu0 %v858
          %v1265 = vpop.f32.mrb[0].mxu0
          %v1266 = vadd.f32 0.0, %v1265
          %v1267 = vpop.f32.mrb[0].mxu0
          %v1268 = vpop.f32.mrb[0].mxu0
          %v1269 = vadd.f32 0.0, %v1268
          %v1270 = vpop.f32.mrb[0].mxu0
          %1271 = vmatprep.mubr.bf16.mxu0 0
          %1272 = vmatmul.mubr.bf16.gmra.mrb[0].mxu0 %v861
          %v1273 = vpop.f32.mrb[0].mxu0
          %v1274 = vadd.f32 0.0, %v1273
          %v1275 = vpop.f32.mrb[0].mxu0
          %v1276 = vpop.f32.mrb[0].mxu0
          %v1277 = vadd.f32 0.0, %v1276
          %v1278 = vpop.f32.mrb[0].mxu0
          %1279 = vdwg.mxu0
          %1284 = vrot.lane.b32.xlu0 %v1171, 120
          %v1285 = vpop.permute.xlu0 %1284
          %1286 = vrot.lane.b32.xlu0 %v1172, 120
          %v1287 = vpop.permute.xlu0 %1286
          %1288 = vrot.lane.b32.xlu0 %v1173, 120
          %v1289 = vpop.permute.xlu0 %1288
          %1290 = vrot.lane.b32.xlu0 %v1174, 120
          %v1291 = vpop.permute.xlu0 %1290
          %v1293 = vsel %vm681, %v1285, 0
          %v1296 = vsel %vm681, %v1287, 0
          %v1299 = vsel %vm681, %v1289, 0
          %v1302 = vsel %vm681, %v1291, 0
          %v1305 = vsel %vm738, %v1175, 0
          %1307 = vmatprep.subr.bf16.mxu0 0
          %1308 = vmatpush1.bf16.msra.mxu0 %v1305
          %1309 = vmatprep.subr.bf16.mxu0 0
          %1310 = vmatpush1.bf16.msra.mxu0 0
          %1311 = vmatprep.subr.bf16.mxu0 0
          %1312 = vmatpush1.bf16.msra.mxu0 0
          %1313 = vmatprep.subr.bf16.mxu0 0
          %1314 = vmatpush1.bf16.msra.mxu0 0
          %1315 = vmatprep.subr.bf16.mxu0 0
          %1316 = vmatpush1.bf16.msra.mxu0 0
          %1317 = vmatprep.subr.bf16.mxu0 0
          %1318 = vmatpush1.bf16.msra.mxu0 0
          %1319 = vmatprep.subr.bf16.mxu0 0
          %1320 = vmatpush1.bf16.msra.mxu0 0
          %1321 = vmatprep.subr.bf16.mxu0 0
          %1322 = vmatpush1.bf16.msra.mxu0 0
          %1323 = vmatprep.subr.bf16.mxu0 0
          %1324 = vmatpush1.bf16.msra.mxu0 0
          %1325 = vmatprep.subr.bf16.mxu0 0
          %1326 = vmatpush1.bf16.msra.mxu0 0
          %1327 = vmatprep.subr.bf16.mxu0 0
          %1328 = vmatpush1.bf16.msra.mxu0 0
          %1329 = vmatprep.subr.bf16.mxu0 0
          %1330 = vmatpush1.bf16.msra.mxu0 0
          %1331 = vmatprep.subr.bf16.mxu0 0
          %1332 = vmatpush1.bf16.msra.mxu0 0
          %1333 = vmatprep.subr.bf16.mxu0 0
          %1334 = vmatpush1.bf16.msra.mxu0 0
          %1335 = vmatprep.subr.bf16.mxu0 0
          %1336 = vmatpush1.bf16.msra.mxu0 0
          %1337 = vmatprep.subr.bf16.mxu0 0
          %1338 = vmatpush1.bf16.msra.mxu0 0
          %1339 = vmatprep.mubr.bf16.mxu0 0
          %1340 = vmatmul.mubr.bf16.gmra.mrb[0].mxu0 %v1293
          %v1341 = vpop.f32.mrb[0].mxu0
          %v1342 = vadd.f32 %v1250, %v1341
          %v1343 = vpop.f32.mrb[0].mxu0
          %v1344 = vpop.f32.mrb[0].mxu0
          %v1345 = vadd.f32 %v1253, %v1344
          %v1346 = vpop.f32.mrb[0].mxu0
          %1347 = vmatprep.mubr.bf16.mxu0 0
          %1348 = vmatmul.mubr.bf16.gmra.mrb[0].mxu0 %v1296
          %v1349 = vpop.f32.mrb[0].mxu0
          %v1350 = vadd.f32 %v1258, %v1349
          %v1351 = vpop.f32.mrb[0].mxu0
          %v1352 = vpop.f32.mrb[0].mxu0
          %v1353 = vadd.f32 %v1261, %v1352
          %v1354 = vpop.f32.mrb[0].mxu0
          %1355 = vmatprep.mubr.bf16.mxu0 0
          %1356 = vmatmul.mubr.bf16.gmra.mrb[0].mxu0 %v1299
          %v1357 = vpop.f32.mrb[0].mxu0
          %v1358 = vadd.f32 %v1266, %v1357
          %v1359 = vpop.f32.mrb[0].mxu0
          %v1360 = vpop.f32.mrb[0].mxu0
          %v1361 = vadd.f32 %v1269, %v1360
          %v1362 = vpop.f32.mrb[0].mxu0
          %1363 = vmatprep.mubr.bf16.mxu0 0
          %1364 = vmatmul.mubr.bf16.gmra.mrb[0].mxu0 %v1302
          %v1365 = vpop.f32.mrb[0].mxu0
          %v1366 = vadd.f32 %v1274, %v1365
          %v1367 = vpop.f32.mrb[0].mxu0
          %v1368 = vpop.f32.mrb[0].mxu0
          %v1369 = vadd.f32 %v1277, %v1368
          %v1370 = vpop.f32.mrb[0].mxu0
          %1371 = vdwg.mxu0
          %v1372 = vld [vmem:[%s9] sm:$0x1]
          %v1374 = vlaneseq
          %v1375 = vshrl.u32 %v1374, 7
          %v1376 = vsub.s32 0, %v1375
          %v1377 = vrot.slane %v1372, %v1376
          %v1379 = vadd.f32 %v1342, %v1377
          %v1380 = vadd.f32 %v1345, %v1377
          %v1381 = vadd.f32 %v1350, %v1377
          %v1382 = vadd.f32 %v1353, %v1377
          %v1383 = vadd.f32 %v1358, %v1377
          %v1384 = vadd.f32 %v1361, %v1377
          %v1385 = vadd.f32 %v1366, %v1377
          %v1386 = vadd.f32 %v1369, %v1377
          %v1387 = vxor.u32 %v1379, 2147483648
          %v1388 = vxor.u32 %v1380, 2147483648
          %v1389 = vxor.u32 %v1381, 2147483648
          %v1390 = vxor.u32 %v1382, 2147483648
          %v1391 = vxor.u32 %v1383, 2147483648
          %v1392 = vxor.u32 %v1384, 2147483648
          %v1393 = vxor.u32 %v1385, 2147483648
          %v1394 = vxor.u32 %v1386, 2147483648
          %v1395 = vmul.f32 %v1387, 1.442695
          %v1396 = vpow.pop %v1395
          %v1397 = vmul.f32 %v1388, 1.442695
          %v1398 = vpow.pop %v1397
          %v1399 = vmul.f32 %v1389, 1.442695
          %v1400 = vpow.pop %v1399
          %v1401 = vmul.f32 %v1390, 1.442695
          %v1402 = vpow.pop %v1401
          %v1403 = vmul.f32 %v1391, 1.442695
          %v1404 = vpow.pop %v1403
          %v1405 = vmul.f32 %v1392, 1.442695
          %v1406 = vpow.pop %v1405
          %v1407 = vmul.f32 %v1393, 1.442695
          %v1408 = vpow.pop %v1407
          %v1409 = vmul.f32 %v1394, 1.442695
          %v1410 = vpow.pop %v1409
          %v1411 = vadd.f32 %v1396, 1.0
          %v1412 = vadd.f32 %v1398, 1.0
          %v1413 = vadd.f32 %v1400, 1.0
          %v1414 = vadd.f32 %v1402, 1.0
          %v1415 = vadd.f32 %v1404, 1.0
          %v1416 = vadd.f32 %v1406, 1.0
          %v1417 = vadd.f32 %v1408, 1.0
          %v1418 = vadd.f32 %v1410, 1.0
          %v1419 = vrcp.pop %v1411
          %v1420 = vmul.f32 1.0, %v1419
          %v1421 = vrcp.pop %v1412
          %v1422 = vmul.f32 1.0, %v1421
          %v1423 = vrcp.pop %v1413
          %v1424 = vmul.f32 1.0, %v1423
          %v1425 = vrcp.pop %v1414
          %v1426 = vmul.f32 1.0, %v1425
          %v1427 = vrcp.pop %v1415
          %v1428 = vmul.f32 1.0, %v1427
          %v1429 = vrcp.pop %v1416
          %v1430 = vmul.f32 1.0, %v1429
          %v1431 = vrcp.pop %v1417
          %v1432 = vmul.f32 1.0, %v1431
          %v1433 = vrcp.pop %v1418
          %v1434 = vmul.f32 1.0, %v1433
          %v1435 = vtanh.pop %v1379
          %v1436 = vtanh.pop %v1380
          %v1437 = vtanh.pop %v1381
          %v1438 = vtanh.pop %v1382
          %v1439 = vtanh.pop %v1383
          %v1440 = vtanh.pop %v1384
          %v1441 = vtanh.pop %v1385
          %v1442 = vtanh.pop %v1386
          %1443 = vrot.lane.b32.xlu0 %v694, 120
          %v1444 = vpop.permute.xlu0 %1443
          %1445 = vrot.lane.b32.xlu0 %v695, 120
          %v1446 = vpop.permute.xlu0 %1445
          %1447 = vrot.lane.b32.xlu0 %v696, 120
          %v1448 = vpop.permute.xlu0 %1447
          %1449 = vrot.lane.b32.xlu0 %v697, 120
          %v1450 = vpop.permute.xlu0 %1449
          %1451 = vrot.lane.b32.xlu0 %v698, 120
          %v1452 = vpop.permute.xlu0 %1451
          %1453 = vrot.lane.b32.xlu0 %v699, 120
          %v1454 = vpop.permute.xlu0 %1453
          %1455 = vrot.lane.b32.xlu0 %v700, 120
          %v1456 = vpop.permute.xlu0 %1455
          %1457 = vrot.lane.b32.xlu0 %v701, 120
          %v1458 = vpop.permute.xlu0 %1457
          %v1467 = vmul.f32 %v1420, %v1444
          %v1468 = vmul.f32 %v1422, %v1446
          %v1469 = vmul.f32 %v1424, %v1448
          %v1470 = vmul.f32 %v1426, %v1450
          %v1471 = vmul.f32 %v1428, %v1452
          %v1472 = vmul.f32 %v1430, %v1454
          %v1473 = vmul.f32 %v1432, %v1456
          %v1474 = vmul.f32 %v1434, %v1458
          %1483 = vrot.lane.b32.xlu0 %v1435, 64
          %v1484 = vpop.permute.xlu0 %1483
          %1485 = vrot.lane.b32.xlu0 %v1436, 64
          %v1486 = vpop.permute.xlu0 %1485
          %1487 = vrot.lane.b32.xlu0 %v1437, 64
          %v1488 = vpop.permute.xlu0 %1487
          %1489 = vrot.lane.b32.xlu0 %v1438, 64
          %v1490 = vpop.permute.xlu0 %1489
          %1491 = vrot.lane.b32.xlu0 %v1439, 64
          %v1492 = vpop.permute.xlu0 %1491
          %1493 = vrot.lane.b32.xlu0 %v1440, 64
          %v1494 = vpop.permute.xlu0 %1493
          %1495 = vrot.lane.b32.xlu0 %v1441, 64
          %v1496 = vpop.permute.xlu0 %1495
          %1497 = vrot.lane.b32.xlu0 %v1442, 64
          %v1498 = vpop.permute.xlu0 %1497
          %v1507 = vmul.f32 %v1420, %v1484
          %v1508 = vmul.f32 %v1422, %v1486
          %v1509 = vmul.f32 %v1424, %v1488
          %v1510 = vmul.f32 %v1426, %v1490
          %v1511 = vmul.f32 %v1428, %v1492
          %v1512 = vmul.f32 %v1430, %v1494
          %v1513 = vmul.f32 %v1432, %v1496
          %v1514 = vmul.f32 %v1434, %v1498
          %1523 = vrot.lane.b32.xlu0 %v1507, 32
          %v1524 = vpop.permute.xlu0 %1523
          %1525 = vrot.lane.b32.xlu0 %v1508, 32
          %v1526 = vpop.permute.xlu0 %1525
          %1527 = vrot.lane.b32.xlu0 %v1509, 32
          %v1528 = vpop.permute.xlu0 %1527
          %1529 = vrot.lane.b32.xlu0 %v1510, 32
          %v1530 = vpop.permute.xlu0 %1529
          %1531 = vrot.lane.b32.xlu0 %v1511, 32
          %v1532 = vpop.permute.xlu0 %1531
          %1533 = vrot.lane.b32.xlu0 %v1512, 32
          %v1534 = vpop.permute.xlu0 %1533
          %1535 = vrot.lane.b32.xlu0 %v1513, 32
          %v1536 = vpop.permute.xlu0 %1535
          %1537 = vrot.lane.b32.xlu0 %v1514, 32
          %v1538 = vpop.permute.xlu0 %1537
          %v1547 = vadd.f32 %v1467, %v1524
          %v1548 = vadd.f32 %v1468, %v1526
          %v1549 = vadd.f32 %v1469, %v1528
          %v1550 = vadd.f32 %v1470, %v1530
          %v1551 = vadd.f32 %v1471, %v1532
          %v1552 = vadd.f32 %v1472, %v1534
          %v1553 = vadd.f32 %v1473, %v1536
          %v1554 = vadd.f32 %v1474, %v1538
          %v1555 = vtanh.pop %v1547
          %v1556 = vtanh.pop %v1548
          %v1557 = vtanh.pop %v1549
          %v1558 = vtanh.pop %v1550
          %v1559 = vtanh.pop %v1551
          %v1560 = vtanh.pop %v1552
          %v1561 = vtanh.pop %v1553
          %v1562 = vtanh.pop %v1554
          %1571 = vrot.lane.b32.xlu0 %v1555, 64
          %v1572 = vpop.permute.xlu0 %1571
          %1573 = vrot.lane.b32.xlu0 %v1556, 64
          %v1574 = vpop.permute.xlu0 %1573
          %1575 = vrot.lane.b32.xlu0 %v1557, 64
          %v1576 = vpop.permute.xlu0 %1575
          %1577 = vrot.lane.b32.xlu0 %v1558, 64
          %v1578 = vpop.permute.xlu0 %1577
          %1579 = vrot.lane.b32.xlu0 %v1559, 64
          %v1580 = vpop.permute.xlu0 %1579
          %1581 = vrot.lane.b32.xlu0 %v1560, 64
          %v1582 = vpop.permute.xlu0 %1581
          %1583 = vrot.lane.b32.xlu0 %v1561, 64
          %v1584 = vpop.permute.xlu0 %1583
          %1585 = vrot.lane.b32.xlu0 %v1562, 64
          %v1586 = vpop.permute.xlu0 %1585
          %v1595 = vmul.f32 %v1420, %v1572
          %v1596 = vmul.f32 %v1422, %v1574
          %v1597 = vmul.f32 %v1424, %v1576
          %v1598 = vmul.f32 %v1426, %v1578
          %v1599 = vmul.f32 %v1428, %v1580
          %v1600 = vmul.f32 %v1430, %v1582
          %v1601 = vmul.f32 %v1432, %v1584
          %v1602 = vmul.f32 %v1434, %v1586
          %1611 = vrot.lane.b32.xlu0 %v1595, 32
          %v1612 = vpop.permute.xlu0 %1611
          %1613 = vrot.lane.b32.xlu0 %v1596, 32
          %v1614 = vpop.permute.xlu0 %1613
          %1615 = vrot.lane.b32.xlu0 %v1597, 32
          %v1616 = vpop.permute.xlu0 %1615
          %1617 = vrot.lane.b32.xlu0 %v1598, 32
          %v1618 = vpop.permute.xlu0 %1617
          %1619 = vrot.lane.b32.xlu0 %v1599, 32
          %v1620 = vpop.permute.xlu0 %1619
          %1621 = vrot.lane.b32.xlu0 %v1600, 32
          %v1622 = vpop.permute.xlu0 %1621
          %1623 = vrot.lane.b32.xlu0 %v1601, 32
          %v1624 = vpop.permute.xlu0 %1623
          %1625 = vrot.lane.b32.xlu0 %v1602, 32
          %v1626 = vpop.permute.xlu0 %1625
          %vm1635 = vcmask 261120
          %v1636 = vsel %vm1635, %v1612, %v1547
          %v1637 = vsel %vm1635, %v1614, %v1548
          %v1638 = vsel %vm1635, %v1616, %v1549
          %v1639 = vsel %vm1635, %v1618, %v1550
          %v1640 = vsel %vm1635, %v1620, %v1551
          %v1641 = vsel %vm1635, %v1622, %v1552
          %v1642 = vsel %vm1635, %v1624, %v1553
          %v1643 = vsel %vm1635, %v1626, %v1554
          %vm1644 = vcmask 523264
          %v1645 = vsel %vm1644, %v1636, 0.0
          %v1646 = vsel %vm1644, %v1637, 0.0
          %v1647 = vsel %vm1644, %v1638, 0.0
          %v1648 = vsel %vm1644, %v1639, 0.0
          %v1649 = vsel %vm1644, %v1640, 0.0
          %v1650 = vsel %vm1644, %v1641, 0.0
          %v1651 = vsel %vm1644, %v1642, 0.0
          %v1652 = vsel %vm1644, %v1643, 0.0
          %1653 = vst [vmem:[%s475] sm:$0xff] %v1645
          %1654 = vst [vmem:[%s475 + $0x8] sm:$0xff] %v1646
          %1655 = vst [vmem:[%s475 + $0x10] sm:$0xff] %v1647
          %1656 = vst [vmem:[%s475 + $0x18] sm:$0xff] %v1648
          %1657 = vst [vmem:[%s475 + $0x20] sm:$0xff] %v1649
          %1658 = vst [vmem:[%s475 + $0x28] sm:$0xff] %v1650
          %1659 = vst [vmem:[%s475 + $0x30] sm:$0xff] %v1651
          %1660 = vst [vmem:[%s475 + $0x38] sm:$0xff] %v1652
        $region109: #{tpu_custom_call.1} parent=96 // pred_fallthru
          _
        %s1661 = sand.u32 %s271, 1
        %s1662 = scalar_lea.sflag [#allocation5], %s1661
        %s1663 = sand.u32 %s271, 1
        %s1664 = smul.addr %s1663, 64
        %s1665 = scalar_lea.vmem [#allocation4], %s1664
        // Predicated region
        $region110: #{tpu_custom_call.1} parent=96 // pred_check
          %p1666 = pneg %p281
        $region111: #{tpu_custom_call.1} parent=96 // pred_check_branch
          %1668 = sbr.rel (%p1666) target = $region113
        $region112: #{tpu_custom_call.1} parent=96 // pred_region
          %s1669 = smul.u32 8, %s28
          %s1671 = ssub.s32 1024, 1024
          %1672 = vsyncadd %s1662, %s1671
          %s1673 = smul.addr %s1669, 128
          %s1674 = scalar_lea.hbm %s10, %s1673
          %s1675 = sshll.u32 %s1665, 4
          %s1676 = int_to_ptr.vmem [resolvable:$true] %s1675
          %1681 = dma.vmem_to_hbm [thread:$0]  %s1676, 1024, %s1674, %s1662, 128, 128, 8
        $region113: #{tpu_custom_call.1} parent=96 // pred_fallthru
          _
      $region97: #{tpu_custom_call.1} parent=5 // pred_fallthru
        _
      %p1682 = scmp.le.s32.totalorder 2, %s19
      // Predicated region
      $region114: #{tpu_custom_call.1} parent=5 // pred_check
        %p1683 = pneg %p1682
      $region115: #{tpu_custom_call.1} parent=5 // pred_check_branch
        %1685 = sbr.rel (%p1683) target = $region117
      $region116: #{tpu_custom_call.1} parent=5 // pred_region
        %s1686 = ssub.s32 %s19, 2
        // Predicated region
        $region118: #{tpu_custom_call.1} parent=116 // pred_check
          %p1687 = pneg %p287
        $region119: #{tpu_custom_call.1} parent=116 // pred_check_branch
          %1689 = sbr.rel (%p1687) target = $region121
        $region120: #{tpu_custom_call.1} parent=116 // pred_region
          %s1690 = sand.u32 %s272, 1
          %s1691 = scalar_lea.sflag [#allocation5], %s1690
          %s1692 = sand.u32 %s272, 1
          %s1693 = smul.addr %s1692, 64
          %s1694 = scalar_lea.vmem [#allocation4], %s1693
          %1695 = dma.done %s1691, 1024
        $region121: #{tpu_custom_call.1} parent=116 // pred_fallthru
          _
      $region117: #{tpu_custom_call.1} parent=5 // pred_fallthru
        _
    $region6: #{tpu_custom_call.1} parent=1 // loop_footer
      %s23 = sadd.s32 1, %s19
    $region7: #{tpu_custom_call.1} parent=1 // loop_footer_branch
      %18 = sbr.rel target = $region3
    $region8: #{tpu_custom_call.1} parent=1 // loop_exit
      _
    %1696 = vsyncpa [#allocation5], 1
    %s1697 = scalar_lea.sflag [#allocation5], 1
    %1698 = vsyncpa %s1697, 1

</llo_original>
